<compile_context>
chip_gen: v7x
topology: tpu7x:2x2x1
jax: 0.10.0
libtpu: 0.0.40
codegen_flags: <defaults>
</compile_context>

<pallas_src>
import functools

import jax
import jax.numpy as jnp
from jax import lax
from jax.experimental import pallas as pl
from jax.experimental.pallas import tpu as pltpu


_VMEM_LIMIT_BYTES = 64 * 1024 * 1024   # smallest per-TC physical VMEM (v7x); also the
                                       # scoped limit we request (> v5e/v6e defaults).
_VMEM_BUDGET_FRACTION = 0.6            # keep pipelined blocks under ~60% of the limit.


def _round_up(n, m):
    return (n + m - 1) // m * m


def _buffered_supported():
    """Feature-detect pl.Buffered / BlockSpec(pipeline_mode=...) at construction time."""
    try:
        pl.BlockSpec((8, 128), lambda b, t: (0, 0), pipeline_mode=pl.Buffered(1))
        return True
    except (AttributeError, TypeError):
        return False


_HAS_BUFFERED = _buffered_supported()


def _itemsize(dt):
    return jax.dtypes.canonicalize_dtype(dt).itemsize


def _pick_time_chunk(L, BB, Hp, gx_itemsize, h_itemsize, wh_itemsize, wh_buffers):
    """Largest time chunk (divisor of L, <= 64) whose VMEM working set fits the budget.

    Working set = 2x double-buffered gx block + 2x double-buffered h_out block
                  + wh_buffers * Wh + 2x f32 (BB, Hp) carries.
    """
    budget = int(_VMEM_LIMIT_BYTES * _VMEM_BUDGET_FRACTION)
    G4 = 4 * Hp
    fixed = wh_buffers * Hp * G4 * wh_itemsize + 2 * BB * Hp * 4
    per_t = 2 * BB * G4 * gx_itemsize + 2 * BB * Hp * h_itemsize
    for c in sorted((d for d in range(1, min(L, 64) + 1) if L % d == 0), reverse=True):
        if fixed + c * per_t <= budget:
            return c
    return 1


def _pick_unroll(T, BB, Hp):
    """Bound the fori_loop unroll by the per-step live set (in f32 vregs)."""
    step_vregs = (BB * 4 * Hp + 2 * BB * Hp) // 1024   # gates + h + c
    if step_vregs <= 8:
        return True                                    # tiny live set: full unroll
    if step_vregs <= 24:
        return min(T, 4)
    return min(T, 2)


def _lstm_recurrence_kernel(gx_ref, wh_ref, h_out_ref, h_ref, c_ref, *, unroll):
    """One grid step = T timesteps of the recurrence for one batch block.

    grid       = (batch_blocks ["parallel"], time_chunks ["arbitrary"])
    gx_ref     : (T, BB, 4*Hp)  precomputed x@Wx + b chunk (f32 or bf16)
    wh_ref     : (Hp, 4*Hp)     recurrent weights, gate-major i,f,o,g
    h_out_ref  : (T, BB, Hp)    hidden state written per timestep (lane dense)
    h_ref/c_ref: (BB, Hp) f32   carries across the inner time grid axis
    """
    Hp = h_ref.shape[1]
    T = gx_ref.shape[0]

    # New batch block -> reset carries (time is the inner, serial grid axis).
    @pl.when(pl.program_id(1) == 0)
    def _():
        h_ref[...] = jnp.zeros_like(h_ref)   # h0 = 0
        c_ref[...] = jnp.ones_like(c_ref)    # c0 = 0 + 1 (module quirk, intentional)

    wh = wh_ref[...]                         # f32 or bf16

    def step(s, carry):
        h, c = carry
        # Only the h-path matmul remains on the serial critical path; f32 accumulate.
        gates = (jnp.dot(h.astype(wh.dtype), wh,
                         preferred_element_type=jnp.float32)
                 + gx_ref[s].astype(jnp.float32))            # (BB, 4*Hp) f32
        # All four gates use sigmoid in this module: one wide EUP pass, then slice.
        sg = jax.nn.sigmoid(gates)
        i = sg[:, 0 * Hp:1 * Hp]
        f = sg[:, 1 * Hp:2 * Hp]
        o = sg[:, 2 * Hp:3 * Hp]
        g = sg[:, 3 * Hp:4 * Hp]                             # sigmoid (not tanh): module quirk
        c = f * c + i * g
        h = o * jnp.tanh(c)
        h_out_ref[s] = h.astype(h_out_ref.dtype)
        return h, c

    h, c = lax.fori_loop(0, T, step, (h_ref[...], c_ref[...]), unroll=unroll)
    h_ref[...] = h
    c_ref[...] = c


def _run_recurrence(gx_tm, wh_p, chunk, num_batch_blocks, unroll, out_dtype,
                    single_buffer_wh):
    L, Bp, G4 = gx_tm.shape
    Hp = G4 // 4
    BB = Bp // num_batch_blocks

    wh_kwargs = {}
    if single_buffer_wh:
        # Constant-index weight input: one VMEM buffer is enough.
        wh_kwargs["pipeline_mode"] = pl.Buffered(1)
    wh_spec = pl.BlockSpec((Hp, G4), lambda b, t: (0, 0), **wh_kwargs)

    return pl.pallas_call(
        functools.partial(_lstm_recurrence_kernel, unroll=unroll),
        out_shape=jax.ShapeDtypeStruct((L, Bp, Hp), out_dtype),
        grid_spec=pltpu.PrefetchScalarGridSpec(
            num_scalar_prefetch=0,
            # Batch blocks shard across TensorCores (v7x megacore); the serial
            # time recurrence stays on the inner "arbitrary" axis.
            grid=(num_batch_blocks, L // chunk),
            in_specs=[
                pl.BlockSpec((chunk, BB, G4), lambda b, t: (t, b, 0)),
                wh_spec,
            ],
            out_specs=pl.BlockSpec((chunk, BB, Hp), lambda b, t: (t, b, 0)),
            scratch_shapes=[
                pltpu.VMEM((BB, Hp), jnp.float32),   # h carry
                pltpu.VMEM((BB, Hp), jnp.float32),   # c carry
            ],
        ),
        compiler_params=pltpu.CompilerParams(
            dimension_semantics=("parallel", "arbitrary"),
            vmem_limit_bytes=_VMEM_LIMIT_BYTES,
        ),
    )(gx_tm, wh_p)


def _pad_gates(w, H, Hp):
    """(..., 4H) gate-major -> (..., 4Hp): each gate block zero-padded to Hp."""
    pads = [(0, 0)] * (w.ndim - 1) + [(0, Hp - H)]
    parts = [jnp.pad(w[..., k * H:(k + 1) * H], pads) for k in range(4)]
    return jnp.concatenate(parts, axis=-1)


def lstm_forward(x, params, *, matmul_dtype=jnp.float32, time_chunk=None):
    """x: (batch, length, input_dim) float32 -> (batch, output_dim, length)."""
    wx, wh, b, wl, bl = params
    B, L, D = x.shape
    H = wh.shape[0]
    O = wl.shape[1]

    # Storage dtype of the streamed tensors (gx in, h_out out): bf16 halves the
    # dominant HBM traffic and the double-buffer VMEM footprint on the bf16
    # matmul path. Gate nonlinearities and h/c carries stay f32 (no bf16 VPU/EUP
    # on v5e; also closest to the torch module numerics).
    storage_dtype = jnp.bfloat16 if matmul_dtype == jnp.bfloat16 else jnp.float32
    sub = 16 if storage_dtype == jnp.bfloat16 else 8   # sublane packing of storage dtype

    Hp = _round_up(H, 128)   # lane-aligned gate blocks & lane-dense h output

    # v7x has 2 TensorCores: split the batch into two sublane-aligned blocks on
    # the outer "parallel" grid axis once there is enough batch to do so.
    if B >= 2 * sub:
        Bp = _round_up(B, 2 * sub)
        num_batch_blocks = 2
    else:
        Bp = _round_up(B, sub)
        num_batch_blocks = 1
    BB = Bp // num_batch_blocks
    # TODO(synk): at tiny batch (BB=8) the per-step h@Wh matmul underfills the MXU
    # rows and re-pushes Wh every timestep; for genuinely tiny batches keep Wh
    # resident across a chunk via pltpu.matmul_push_rhs / matmul_acc_lhs / matmul_pop.

    wh_buffers = 1 if _HAS_BUFFERED else 2
    if time_chunk is None:
        time_chunk = _pick_time_chunk(
            L, BB, Hp,
            gx_itemsize=_itemsize(storage_dtype),
            h_itemsize=_itemsize(storage_dtype),
            wh_itemsize=_itemsize(matmul_dtype),
            wh_buffers=wh_buffers)
    unroll = _pick_unroll(time_chunk, BB, Hp)

    # ---- pad & pack parameters (gate-major i,f,o,g; zero padding) ----------
    wx_p = _pad_gates(wx, H, Hp).astype(matmul_dtype)                  # (D, 4Hp)
    wh_p = _pad_gates(jnp.pad(wh, ((0, Hp - H), (0, 0))), H, Hp)       # (Hp, 4Hp)
    wh_p = wh_p.astype(matmul_dtype)
    b_p = _pad_gates(b, H, Hp).astype(jnp.float32)                     # (1, 4Hp)

    # ---- hoisted input-path matmul: gx = x @ Wx + b (time-independent) -----
    # TODO(synk): if the gx DMA is exposed on the xprof trace, fuse this matmul
    # into the kernel per time chunk (DMA the (chunk, BB, D) x block instead of
    # the 4Hp-wide gx block) to drop the gx HBM round-trip entirely.
    x_tm = jnp.transpose(x, (1, 0, 2))                                 # (L, B, D)
    x_tm = jnp.pad(x_tm, ((0, 0), (0, Bp - B), (0, 0)))                # (L, Bp, D)
    gx = (jnp.dot(x_tm.reshape(L * Bp, D).astype(matmul_dtype), wx_p,
                  preferred_element_type=jnp.float32) + b_p)
    gx = gx.reshape(L, Bp, 4 * Hp).astype(storage_dtype)

    # ---- serial recurrence (the only un-hoistable compute) -----------------
    if _HAS_BUFFERED:
        try:
            h_slab = _run_recurrence(gx, wh_p, time_chunk, num_batch_blocks,
                                     unroll, storage_dtype, single_buffer_wh=True)
        except pltpu.LoweringException:
            # Narrow fallback: only if Mosaic rejects single-buffering of Wh.
            h_slab = _run_recurrence(gx, wh_p, time_chunk, num_batch_blocks,
                                     unroll, storage_dtype, single_buffer_wh=False)
    else:
        h_slab = _run_recurrence(gx, wh_p, time_chunk, num_batch_blocks,
                                 unroll, storage_dtype, single_buffer_wh=False)

    # ---- hoisted output projection, then the exact torch epilogue ----------
    h_flat = h_slab[:, :B, :H].reshape(L * B, H)          # time-major, unpadded
    y = (jnp.dot(h_flat.astype(matmul_dtype), wl.astype(matmul_dtype),
                 preferred_element_type=jnp.float32) + bl)             # (L*B, O)
    # torch: cat over t -> (L*B, O); .view((O, B, L)); .transpose(0, 1)
    # (raw memory reinterpretation, faithful to the module — not a semantic transpose)
    return jnp.transpose(y.reshape(O, B, L), (1, 0, 2))                # (B, O, L)


def init_params(key, input_dim, hidden_dim, output_dim):
    """Deterministic params, mimicking nn.Linear uniform(-1/sqrt(fan_in), ...)."""
    ks = jax.random.split(key, 18)

    def lin(kw, kb, fan_in, fan_out):
        bound = 1.0 / jnp.sqrt(fan_in)
        w = jax.random.uniform(kw, (fan_out, fan_in), jnp.float32, -bound, bound)
        b = jax.random.uniform(kb, (fan_out,), jnp.float32, -bound, bound)
        return w, b

    # gate order: i, f, o, g
    wxi, bxi = lin(ks[0], ks[1], input_dim, hidden_dim)
    whi, bhi = lin(ks[2], ks[3], hidden_dim, hidden_dim)
    wxf, bxf = lin(ks[4], ks[5], input_dim, hidden_dim)
    whf, bhf = lin(ks[6], ks[7], hidden_dim, hidden_dim)
    wxo, bxo = lin(ks[8], ks[9], input_dim, hidden_dim)
    who, bho = lin(ks[10], ks[11], hidden_dim, hidden_dim)
    wxg, bxg = lin(ks[12], ks[13], input_dim, hidden_dim)
    whg, bhg = lin(ks[14], ks[15], hidden_dim, hidden_dim)
    wlin, blin = lin(ks[16], ks[17], hidden_dim, output_dim)

    # fold the 8 linears into two stacked matmuls (x-path and h-path)
    wx = jnp.concatenate([wxi.T, wxf.T, wxo.T, wxg.T], axis=1)        # (D, 4H)
    wh = jnp.concatenate([whi.T, whf.T, who.T, whg.T], axis=1)        # (H, 4H)
    b = jnp.concatenate([bxi + bhi, bxf + bhf, bxo + bho, bxg + bhg])[None, :]
    wl = wlin.T                                                       # (H, O)
    bl = blin[None, :]                                                # (1, O)
    return wx, wh, b, wl, bl


def _reference_forward(x, params):
    """Pure-JAX reference of the exact PyTorch semantics (sanity check)."""
    wx, wh, b, wl, bl = params
    B, L, D = x.shape
    H = wh.shape[0]
    O = wl.shape[1]
    h = jnp.zeros((B, H), jnp.float32)
    c = jnp.ones((B, H), jnp.float32)
    ys = []
    for t in range(L):
        g_all = x[:, t, :] @ wx + h @ wh + b
        i = jax.nn.sigmoid(g_all[:, 0 * H:1 * H])
        f = jax.nn.sigmoid(g_all[:, 1 * H:2 * H])
        o = jax.nn.sigmoid(g_all[:, 2 * H:3 * H])
        g = jax.nn.sigmoid(g_all[:, 3 * H:4 * H])
        c = f * c + i * g
        h = o * jnp.tanh(c)
        ys.append(h @ wl + bl)
    flat = jnp.concatenate(ys, axis=0)            # (L*B, O)
    return jnp.transpose(flat.reshape(O, B, L), (1, 0, 2))


if __name__ == "__main__":
    INPUT_DIM, HIDDEN_DIM, OUTPUT_DIM = 4, 32, 8
    BATCH, LENGTH = 2, 8

    key = jax.random.PRNGKey(0)
    kx, kp, kx2 = jax.random.split(key, 3)
    x = jax.random.normal(kx, (BATCH, LENGTH, INPUT_DIM), jnp.float32)
    params = init_params(kp, INPUT_DIM, HIDDEN_DIM, OUTPUT_DIM)

    ref = jax.block_until_ready(_reference_forward(x, params))

    # f32 matmul operands: bit-faithful to the module semantics.
    out = jax.block_until_ready(lstm_forward(x, params))
    assert out.shape == (BATCH, OUTPUT_DIM, LENGTH), out.shape
    assert jnp.allclose(out, ref, atol=1e-5, rtol=1e-5), "f32 mismatch vs reference"

    # bf16 matmul operands + bf16 gx / h_out storage (f32 accumulate & elementwise).
    # TODO(synk): bf16 error compounds over timesteps; re-validate tolerance for long L.
    out_bf16 = jax.block_until_ready(
        lstm_forward(x, params, matmul_dtype=jnp.bfloat16))
    assert jnp.allclose(out_bf16, ref, atol=1e-1, rtol=1e-1), "bf16 mismatch"

    # Exercise the batch-sharded path (outer "parallel" batch grid axis, used to
    # occupy both v7x TensorCores) at a still-small batch.
    x16 = jax.random.normal(kx2, (16, LENGTH, INPUT_DIM), jnp.float32)
    ref16 = jax.block_until_ready(_reference_forward(x16, params))
    out16 = jax.block_until_ready(lstm_forward(x16, params))
    assert out16.shape == (16, OUTPUT_DIM, LENGTH), out16.shape
    assert jnp.allclose(out16, ref16, atol=1e-5, rtol=1e-5), "batch-sharded mismatch"

    print("KERNEL_OK")
</pallas_src>

<mosaic_0001>
module attributes {stable_mosaic.version = 11 : i64} {
  func.func @_lstm_recurrence_kernel(%arg0: i32, %arg1: i32, %arg2: memref<8x8x512xf32, #tpu.memory_space<vmem>>, %arg3: memref<128x512xf32, #tpu.memory_space<vmem>>, %arg4: memref<8x8x128xf32, #tpu.memory_space<vmem>>, %arg5: memref<8x128xf32, #tpu.memory_space<vmem>>, %arg6: memref<8x128xf32, #tpu.memory_space<vmem>>) attributes {dimension_semantics = [#tpu.dimension_semantics<parallel>, #tpu.dimension_semantics<arbitrary>], iteration_bounds = array<i64: 1, 1>, scalar_prefetch = 0 : i64, scratch_operands = 2 : i64, tpu.core_type = #tpu.core_type<tc>, window_params = [{transform_indices = @transform_0, window_bounds = array<i64: 8, 8, 512>}, {pipeline_mode = #tpu.pipeline_mode<synchronous>, transform_indices = @transform_1, window_bounds = array<i64: 128, 512>}, {transform_indices = @transform_2, window_bounds = array<i64: 8, 8, 128>}]} {
    %c0_i32 = arith.constant 0 : i32
    %0 = arith.cmpi eq, %arg1, %c0_i32 : i32
    %1 = arith.extui %0 : i1 to i32
    %c0_i32_0 = arith.constant 0 : i32
    %2 = arith.cmpi ne, %1, %c0_i32_0 : i32
    scf.if %2 {
      %cst_58 = arith.constant 0.000000e+00 : f32
      %192 = vector.broadcast %cst_58 : f32 to vector<8x128xf32>
      %c0_59 = arith.constant 0 : index
      %c0_60 = arith.constant 0 : index
      %193 = vector.load %arg5[%c0_59, %c0_60] : memref<8x128xf32, #tpu.memory_space<vmem>>, vector<8x128xf32>
      tpu.vector_store %arg5[%c0_59, %c0_60], %192 {strides = array<i32>} : memref<8x128xf32, #tpu.memory_space<vmem>>, vector<8x128xf32>,
      %cst_61 = arith.constant 1.000000e+00 : f32
      %194 = vector.broadcast %cst_61 : f32 to vector<8x128xf32>
      %c0_62 = arith.constant 0 : index
      %c0_63 = arith.constant 0 : index
      %195 = vector.load %arg6[%c0_62, %c0_63] : memref<8x128xf32, #tpu.memory_space<vmem>>, vector<8x128xf32>
      tpu.vector_store %arg6[%c0_62, %c0_63], %194 {strides = array<i32>} : memref<8x128xf32, #tpu.memory_space<vmem>>, vector<8x128xf32>,
    } else {
    }
    %c0 = arith.constant 0 : index
    %c0_1 = arith.constant 0 : index
    %3 = vector.load %arg3[%c0, %c0_1] : memref<128x512xf32, #tpu.memory_space<vmem>>, vector<128x512xf32>
    %c0_2 = arith.constant 0 : index
    %c0_3 = arith.constant 0 : index
    %4 = vector.load %arg5[%c0_2, %c0_3] : memref<8x128xf32, #tpu.memory_space<vmem>>, vector<8x128xf32>
    %c0_4 = arith.constant 0 : index
    %c0_5 = arith.constant 0 : index
    %5 = vector.load %arg6[%c0_4, %c0_5] : memref<8x128xf32, #tpu.memory_space<vmem>>, vector<8x128xf32>
    %c0_i32_6 = arith.constant 0 : i32
    %cst = arith.constant dense<0.000000e+00> : vector<8x512xf32>
    %6 = tpu.matmul %4, %3, %cst {dimension_numbers = #tpu.dot_dimension_numbers<[1], [0], [0], [1], [0, 0, 1, 1], [], []>} : vector<8x128xf32>, vector<128x512xf32>, vector<8x512xf32> -> vector<8x512xf32>
    %7 = arith.index_cast %c0_i32_6 : i32 to index
    %c0_7 = arith.constant 0 : index
    %c0_8 = arith.constant 0 : index
    %8 = vector.load %arg2[%7, %c0_7, %c0_8] : memref<8x8x512xf32, #tpu.memory_space<vmem>>, vector<1x8x512xf32>
    %9 = vector.shape_cast %8 : vector<1x8x512xf32> to vector<8x512xf32>
    %10 = arith.addf %6, %9 : vector<8x512xf32>
    %11 = arith.negf %10 : vector<8x512xf32>
    %12 = math.exp %11 : vector<8x512xf32>
    %cst_9 = arith.constant 1.000000e+00 : f32
    %13 = vector.broadcast %cst_9 : f32 to vector<8x512xf32>
    %14 = arith.addf %13, %12 : vector<8x512xf32>
    %15 = arith.divf %13, %14 : vector<8x512xf32>
    %16 = vector.extract_strided_slice %15 {offsets = [0, 0], sizes = [8, 128], strides = [1, 1]} : vector<8x512xf32> to vector<8x128xf32>
    %17 = vector.extract_strided_slice %15 {offsets = [0, 128], sizes = [8, 128], strides = [1, 1]} : vector<8x512xf32> to vector<8x128xf32>
    %18 = vector.extract_strided_slice %15 {offsets = [0, 256], sizes = [8, 128], strides = [1, 1]} : vector<8x512xf32> to vector<8x128xf32>
    %19 = vector.extract_strided_slice %15 {offsets = [0, 384], sizes = [8, 128], strides = [1, 1]} : vector<8x512xf32> to vector<8x128xf32>
    %20 = arith.mulf %17, %5 : vector<8x128xf32>
    %21 = arith.mulf %16, %19 : vector<8x128xf32>
    %22 = arith.addf %20, %21 : vector<8x128xf32>
    %23 = math.tanh %22 : vector<8x128xf32>
    %24 = arith.mulf %18, %23 : vector<8x128xf32>
    %25 = arith.index_cast %c0_i32_6 : i32 to index
    %c0_10 = arith.constant 0 : index
    %c0_11 = arith.constant 0 : index
    %26 = vector.load %arg4[%25, %c0_10, %c0_11] : memref<8x8x128xf32, #tpu.memory_space<vmem>>, vector<1x8x128xf32>
    %27 = vector.shape_cast %26 : vector<1x8x128xf32> to vector<8x128xf32>
    %28 = vector.shape_cast %24 : vector<8x128xf32> to vector<1x8x128xf32>
    tpu.vector_store %arg4[%25, %c0_10, %c0_11], %28 {strides = array<i32>} : memref<8x8x128xf32, #tpu.memory_space<vmem>>, vector<1x8x128xf32>,
    %c1_i32 = arith.constant 1 : i32
    %cst_12 = arith.constant dense<0.000000e+00> : vector<8x512xf32>
    %29 = tpu.matmul %24, %3, %cst_12 {dimension_numbers = #tpu.dot_dimension_numbers<[1], [0], [0], [1], [0, 0, 1, 1], [], []>} : vector<8x128xf32>, vector<128x512xf32>, vector<8x512xf32> -> vector<8x512xf32>
    %30 = arith.index_cast %c1_i32 : i32 to index
    %c0_13 = arith.constant 0 : index
    %c0_14 = arith.constant 0 : index
    %31 = vector.load %arg2[%30, %c0_13, %c0_14] : memref<8x8x512xf32, #tpu.memory_space<vmem>>, vector<1x8x512xf32>
    %32 = vector.shape_cast %31 : vector<1x8x512xf32> to vector<8x512xf32>
    %33 = arith.addf %29, %32 : vector<8x512xf32>
    %34 = arith.negf %33 : vector<8x512xf32>
    %35 = math.exp %34 : vector<8x512xf32>
    %cst_15 = arith.constant 1.000000e+00 : f32
    %36 = vector.broadcast %cst_15 : f32 to vector<8x512xf32>
    %37 = arith.addf %36, %35 : vector<8x512xf32>
    %38 = arith.divf %36, %37 : vector<8x512xf32>
    %39 = vector.extract_strided_slice %38 {offsets = [0, 0], sizes = [8, 128], strides = [1, 1]} : vector<8x512xf32> to vector<8x128xf32>
    %40 = vector.extract_strided_slice %38 {offsets = [0, 128], sizes = [8, 128], strides = [1, 1]} : vector<8x512xf32> to vector<8x128xf32>
    %41 = vector.extract_strided_slice %38 {offsets = [0, 256], sizes = [8, 128], strides = [1, 1]} : vector<8x512xf32> to vector<8x128xf32>
    %42 = vector.extract_strided_slice %38 {offsets = [0, 384], sizes = [8, 128], strides = [1, 1]} : vector<8x512xf32> to vector<8x128xf32>
    %43 = arith.mulf %40, %22 : vector<8x128xf32>
    %44 = arith.mulf %39, %42 : vector<8x128xf32>
    %45 = arith.addf %43, %44 : vector<8x128xf32>
    %46 = math.tanh %45 : vector<8x128xf32>
    %47 = arith.mulf %41, %46 : vector<8x128xf32>
    %48 = arith.index_cast %c1_i32 : i32 to index
    %c0_16 = arith.constant 0 : index
    %c0_17 = arith.constant 0 : index
    %49 = vector.load %arg4[%48, %c0_16, %c0_17] : memref<8x8x128xf32, #tpu.memory_space<vmem>>, vector<1x8x128xf32>
    %50 = vector.shape_cast %49 : vector<1x8x128xf32> to vector<8x128xf32>
    %51 = vector.shape_cast %47 : vector<8x128xf32> to vector<1x8x128xf32>
    tpu.vector_store %arg4[%48, %c0_16, %c0_17], %51 {strides = array<i32>} : memref<8x8x128xf32, #tpu.memory_space<vmem>>, vector<1x8x128xf32>,
    %c2_i32 = arith.constant 2 : i32
    %cst_18 = arith.constant dense<0.000000e+00> : vector<8x512xf32>
    %52 = tpu.matmul %47, %3, %cst_18 {dimension_numbers = #tpu.dot_dimension_numbers<[1], [0], [0], [1], [0, 0, 1, 1], [], []>} : vector<8x128xf32>, vector<128x512xf32>, vector<8x512xf32> -> vector<8x512xf32>
    %53 = arith.index_cast %c2_i32 : i32 to index
    %c0_19 = arith.constant 0 : index
    %c0_20 = arith.constant 0 : index
    %54 = vector.load %arg2[%53, %c0_19, %c0_20] : memref<8x8x512xf32, #tpu.memory_space<vmem>>, vector<1x8x512xf32>
    %55 = vector.shape_cast %54 : vector<1x8x512xf32> to vector<8x512xf32>
    %56 = arith.addf %52, %55 : vector<8x512xf32>
    %57 = arith.negf %56 : vector<8x512xf32>
    %58 = math.exp %57 : vector<8x512xf32>
    %cst_21 = arith.constant 1.000000e+00 : f32
    %59 = vector.broadcast %cst_21 : f32 to vector<8x512xf32>
    %60 = arith.addf %59, %58 : vector<8x512xf32>
    %61 = arith.divf %59, %60 : vector<8x512xf32>
    %62 = vector.extract_strided_slice %61 {offsets = [0, 0], sizes = [8, 128], strides = [1, 1]} : vector<8x512xf32> to vector<8x128xf32>
    %63 = vector.extract_strided_slice %61 {offsets = [0, 128], sizes = [8, 128], strides = [1, 1]} : vector<8x512xf32> to vector<8x128xf32>
    %64 = vector.extract_strided_slice %61 {offsets = [0, 256], sizes = [8, 128], strides = [1, 1]} : vector<8x512xf32> to vector<8x128xf32>
    %65 = vector.extract_strided_slice %61 {offsets = [0, 384], sizes = [8, 128], strides = [1, 1]} : vector<8x512xf32> to vector<8x128xf32>
    %66 = arith.mulf %63, %45 : vector<8x128xf32>
    %67 = arith.mulf %62, %65 : vector<8x128xf32>
    %68 = arith.addf %66, %67 : vector<8x128xf32>
    %69 = math.tanh %68 : vector<8x128xf32>
    %70 = arith.mulf %64, %69 : vector<8x128xf32>
    %71 = arith.index_cast %c2_i32 : i32 to index
    %c0_22 = arith.constant 0 : index
    %c0_23 = arith.constant 0 : index
    %72 = vector.load %arg4[%71, %c0_22, %c0_23] : memref<8x8x128xf32, #tpu.memory_space<vmem>>, vector<1x8x128xf32>
    %73 = vector.shape_cast %72 : vector<1x8x128xf32> to vector<8x128xf32>
    %74 = vector.shape_cast %70 : vector<8x128xf32> to vector<1x8x128xf32>
    tpu.vector_store %arg4[%71, %c0_22, %c0_23], %74 {strides = array<i32>} : memref<8x8x128xf32, #tpu.memory_space<vmem>>, vector<1x8x128xf32>,
    %c3_i32 = arith.constant 3 : i32
    %cst_24 = arith.constant dense<0.000000e+00> : vector<8x512xf32>
    %75 = tpu.matmul %70, %3, %cst_24 {dimension_numbers = #tpu.dot_dimension_numbers<[1], [0], [0], [1], [0, 0, 1, 1], [], []>} : vector<8x128xf32>, vector<128x512xf32>, vector<8x512xf32> -> vector<8x512xf32>
    %76 = arith.index_cast %c3_i32 : i32 to index
    %c0_25 = arith.constant 0 : index
    %c0_26 = arith.constant 0 : index
    %77 = vector.load %arg2[%76, %c0_25, %c0_26] : memref<8x8x512xf32, #tpu.memory_space<vmem>>, vector<1x8x512xf32>
    %78 = vector.shape_cast %77 : vector<1x8x512xf32> to vector<8x512xf32>
    %79 = arith.addf %75, %78 : vector<8x512xf32>
    %80 = arith.negf %79 : vector<8x512xf32>
    %81 = math.exp %80 : vector<8x512xf32>
    %cst_27 = arith.constant 1.000000e+00 : f32
    %82 = vector.broadcast %cst_27 : f32 to vector<8x512xf32>
    %83 = arith.addf %82, %81 : vector<8x512xf32>
    %84 = arith.divf %82, %83 : vector<8x512xf32>
    %85 = vector.extract_strided_slice %84 {offsets = [0, 0], sizes = [8, 128], strides = [1, 1]} : vector<8x512xf32> to vector<8x128xf32>
    %86 = vector.extract_strided_slice %84 {offsets = [0, 128], sizes = [8, 128], strides = [1, 1]} : vector<8x512xf32> to vector<8x128xf32>
    %87 = vector.extract_strided_slice %84 {offsets = [0, 256], sizes = [8, 128], strides = [1, 1]} : vector<8x512xf32> to vector<8x128xf32>
    %88 = vector.extract_strided_slice %84 {offsets = [0, 384], sizes = [8, 128], strides = [1, 1]} : vector<8x512xf32> to vector<8x128xf32>
    %89 = arith.mulf %86, %68 : vector<8x128xf32>
    %90 = arith.mulf %85, %88 : vector<8x128xf32>
    %91 = arith.addf %89, %90 : vector<8x128xf32>
    %92 = math.tanh %91 : vector<8x128xf32>
    %93 = arith.mulf %87, %92 : vector<8x128xf32>
    %94 = arith.index_cast %c3_i32 : i32 to index
    %c0_28 = arith.constant 0 : index
    %c0_29 = arith.constant 0 : index
    %95 = vector.load %arg4[%94, %c0_28, %c0_29] : memref<8x8x128xf32, #tpu.memory_space<vmem>>, vector<1x8x128xf32>
    %96 = vector.shape_cast %95 : vector<1x8x128xf32> to vector<8x128xf32>
    %97 = vector.shape_cast %93 : vector<8x128xf32> to vector<1x8x128xf32>
    tpu.vector_store %arg4[%94, %c0_28, %c0_29], %97 {strides = array<i32>} : memref<8x8x128xf32, #tpu.memory_space<vmem>>, vector<1x8x128xf32>,
    %c4_i32 = arith.constant 4 : i32
    %cst_30 = arith.constant dense<0.000000e+00> : vector<8x512xf32>
    %98 = tpu.matmul %93, %3, %cst_30 {dimension_numbers = #tpu.dot_dimension_numbers<[1], [0], [0], [1], [0, 0, 1, 1], [], []>} : vector<8x128xf32>, vector<128x512xf32>, vector<8x512xf32> -> vector<8x512xf32>
    %99 = arith.index_cast %c4_i32 : i32 to index
    %c0_31 = arith.constant 0 : index
    %c0_32 = arith.constant 0 : index
    %100 = vector.load %arg2[%99, %c0_31, %c0_32] : memref<8x8x512xf32, #tpu.memory_space<vmem>>, vector<1x8x512xf32>
    %101 = vector.shape_cast %100 : vector<1x8x512xf32> to vector<8x512xf32>
    %102 = arith.addf %98, %101 : vector<8x512xf32>
    %103 = arith.negf %102 : vector<8x512xf32>
    %104 = math.exp %103 : vector<8x512xf32>
    %cst_33 = arith.constant 1.000000e+00 : f32
    %105 = vector.broadcast %cst_33 : f32 to vector<8x512xf32>
    %106 = arith.addf %105, %104 : vector<8x512xf32>
    %107 = arith.divf %105, %106 : vector<8x512xf32>
    %108 = vector.extract_strided_slice %107 {offsets = [0, 0], sizes = [8, 128], strides = [1, 1]} : vector<8x512xf32> to vector<8x128xf32>
    %109 = vector.extract_strided_slice %107 {offsets = [0, 128], sizes = [8, 128], strides = [1, 1]} : vector<8x512xf32> to vector<8x128xf32>
    %110 = vector.extract_strided_slice %107 {offsets = [0, 256], sizes = [8, 128], strides = [1, 1]} : vector<8x512xf32> to vector<8x128xf32>
    %111 = vector.extract_strided_slice %107 {offsets = [0, 384], sizes = [8, 128], strides = [1, 1]} : vector<8x512xf32> to vector<8x128xf32>
    %112 = arith.mulf %109, %91 : vector<8x128xf32>
    %113 = arith.mulf %108, %111 : vector<8x128xf32>
    %114 = arith.addf %112, %113 : vector<8x128xf32>
    %115 = math.tanh %114 : vector<8x128xf32>
    %116 = arith.mulf %110, %115 : vector<8x128xf32>
    %117 = arith.index_cast %c4_i32 : i32 to index
    %c0_34 = arith.constant 0 : index
    %c0_35 = arith.constant 0 : index
    %118 = vector.load %arg4[%117, %c0_34, %c0_35] : memref<8x8x128xf32, #tpu.memory_space<vmem>>, vector<1x8x128xf32>
    %119 = vector.shape_cast %118 : vector<1x8x128xf32> to vector<8x128xf32>
    %120 = vector.shape_cast %116 : vector<8x128xf32> to vector<1x8x128xf32>
    tpu.vector_store %arg4[%117, %c0_34, %c0_35], %120 {strides = array<i32>} : memref<8x8x128xf32, #tpu.memory_space<vmem>>, vector<1x8x128xf32>,
    %c5_i32 = arith.constant 5 : i32
    %cst_36 = arith.constant dense<0.000000e+00> : vector<8x512xf32>
    %121 = tpu.matmul %116, %3, %cst_36 {dimension_numbers = #tpu.dot_dimension_numbers<[1], [0], [0], [1], [0, 0, 1, 1], [], []>} : vector<8x128xf32>, vector<128x512xf32>, vector<8x512xf32> -> vector<8x512xf32>
    %122 = arith.index_cast %c5_i32 : i32 to index
    %c0_37 = arith.constant 0 : index
    %c0_38 = arith.constant 0 : index
    %123 = vector.load %arg2[%122, %c0_37, %c0_38] : memref<8x8x512xf32, #tpu.memory_space<vmem>>, vector<1x8x512xf32>
    %124 = vector.shape_cast %123 : vector<1x8x512xf32> to vector<8x512xf32>
    %125 = arith.addf %121, %124 : vector<8x512xf32>
    %126 = arith.negf %125 : vector<8x512xf32>
    %127 = math.exp %126 : vector<8x512xf32>
    %cst_39 = arith.constant 1.000000e+00 : f32
    %128 = vector.broadcast %cst_39 : f32 to vector<8x512xf32>
    %129 = arith.addf %128, %127 : vector<8x512xf32>
    %130 = arith.divf %128, %129 : vector<8x512xf32>
    %131 = vector.extract_strided_slice %130 {offsets = [0, 0], sizes = [8, 128], strides = [1, 1]} : vector<8x512xf32> to vector<8x128xf32>
    %132 = vector.extract_strided_slice %130 {offsets = [0, 128], sizes = [8, 128], strides = [1, 1]} : vector<8x512xf32> to vector<8x128xf32>
    %133 = vector.extract_strided_slice %130 {offsets = [0, 256], sizes = [8, 128], strides = [1, 1]} : vector<8x512xf32> to vector<8x128xf32>
    %134 = vector.extract_strided_slice %130 {offsets = [0, 384], sizes = [8, 128], strides = [1, 1]} : vector<8x512xf32> to vector<8x128xf32>
    %135 = arith.mulf %132, %114 : vector<8x128xf32>
    %136 = arith.mulf %131, %134 : vector<8x128xf32>
    %137 = arith.addf %135, %136 : vector<8x128xf32>
    %138 = math.tanh %137 : vector<8x128xf32>
    %139 = arith.mulf %133, %138 : vector<8x128xf32>
    %140 = arith.index_cast %c5_i32 : i32 to index
    %c0_40 = arith.constant 0 : index
    %c0_41 = arith.constant 0 : index
    %141 = vector.load %arg4[%140, %c0_40, %c0_41] : memref<8x8x128xf32, #tpu.memory_space<vmem>>, vector<1x8x128xf32>
    %142 = vector.shape_cast %141 : vector<1x8x128xf32> to vector<8x128xf32>
    %143 = vector.shape_cast %139 : vector<8x128xf32> to vector<1x8x128xf32>
    tpu.vector_store %arg4[%140, %c0_40, %c0_41], %143 {strides = array<i32>} : memref<8x8x128xf32, #tpu.memory_space<vmem>>, vector<1x8x128xf32>,
    %c6_i32 = arith.constant 6 : i32
    %cst_42 = arith.constant dense<0.000000e+00> : vector<8x512xf32>
    %144 = tpu.matmul %139, %3, %cst_42 {dimension_numbers = #tpu.dot_dimension_numbers<[1], [0], [0], [1], [0, 0, 1, 1], [], []>} : vector<8x128xf32>, vector<128x512xf32>, vector<8x512xf32> -> vector<8x512xf32>
    %145 = arith.index_cast %c6_i32 : i32 to index
    %c0_43 = arith.constant 0 : index
    %c0_44 = arith.constant 0 : index
    %146 = vector.load %arg2[%145, %c0_43, %c0_44] : memref<8x8x512xf32, #tpu.memory_space<vmem>>, vector<1x8x512xf32>
    %147 = vector.shape_cast %146 : vector<1x8x512xf32> to vector<8x512xf32>
    %148 = arith.addf %144, %147 : vector<8x512xf32>
    %149 = arith.negf %148 : vector<8x512xf32>
    %150 = math.exp %149 : vector<8x512xf32>
    %cst_45 = arith.constant 1.000000e+00 : f32
    %151 = vector.broadcast %cst_45 : f32 to vector<8x512xf32>
    %152 = arith.addf %151, %150 : vector<8x512xf32>
    %153 = arith.divf %151, %152 : vector<8x512xf32>
    %154 = vector.extract_strided_slice %153 {offsets = [0, 0], sizes = [8, 128], strides = [1, 1]} : vector<8x512xf32> to vector<8x128xf32>
    %155 = vector.extract_strided_slice %153 {offsets = [0, 128], sizes = [8, 128], strides = [1, 1]} : vector<8x512xf32> to vector<8x128xf32>
    %156 = vector.extract_strided_slice %153 {offsets = [0, 256], sizes = [8, 128], strides = [1, 1]} : vector<8x512xf32> to vector<8x128xf32>
    %157 = vector.extract_strided_slice %153 {offsets = [0, 384], sizes = [8, 128], strides = [1, 1]} : vector<8x512xf32> to vector<8x128xf32>
    %158 = arith.mulf %155, %137 : vector<8x128xf32>
    %159 = arith.mulf %154, %157 : vector<8x128xf32>
    %160 = arith.addf %158, %159 : vector<8x128xf32>
    %161 = math.tanh %160 : vector<8x128xf32>
    %162 = arith.mulf %156, %161 : vector<8x128xf32>
    %163 = arith.index_cast %c6_i32 : i32 to index
    %c0_46 = arith.constant 0 : index
    %c0_47 = arith.constant 0 : index
    %164 = vector.load %arg4[%163, %c0_46, %c0_47] : memref<8x8x128xf32, #tpu.memory_space<vmem>>, vector<1x8x128xf32>
    %165 = vector.shape_cast %164 : vector<1x8x128xf32> to vector<8x128xf32>
    %166 = vector.shape_cast %162 : vector<8x128xf32> to vector<1x8x128xf32>
    tpu.vector_store %arg4[%163, %c0_46, %c0_47], %166 {strides = array<i32>} : memref<8x8x128xf32, #tpu.memory_space<vmem>>, vector<1x8x128xf32>,
    %c7_i32 = arith.constant 7 : i32
    %cst_48 = arith.constant dense<0.000000e+00> : vector<8x512xf32>
    %167 = tpu.matmul %162, %3, %cst_48 {dimension_numbers = #tpu.dot_dimension_numbers<[1], [0], [0], [1], [0, 0, 1, 1], [], []>} : vector<8x128xf32>, vector<128x512xf32>, vector<8x512xf32> -> vector<8x512xf32>
    %168 = arith.index_cast %c7_i32 : i32 to index
    %c0_49 = arith.constant 0 : index
    %c0_50 = arith.constant 0 : index
    %169 = vector.load %arg2[%168, %c0_49, %c0_50] : memref<8x8x512xf32, #tpu.memory_space<vmem>>, vector<1x8x512xf32>
    %170 = vector.shape_cast %169 : vector<1x8x512xf32> to vector<8x512xf32>
    %171 = arith.addf %167, %170 : vector<8x512xf32>
    %172 = arith.negf %171 : vector<8x512xf32>
    %173 = math.exp %172 : vector<8x512xf32>
    %cst_51 = arith.constant 1.000000e+00 : f32
    %174 = vector.broadcast %cst_51 : f32 to vector<8x512xf32>
    %175 = arith.addf %174, %173 : vector<8x512xf32>
    %176 = arith.divf %174, %175 : vector<8x512xf32>
    %177 = vector.extract_strided_slice %176 {offsets = [0, 0], sizes = [8, 128], strides = [1, 1]} : vector<8x512xf32> to vector<8x128xf32>
    %178 = vector.extract_strided_slice %176 {offsets = [0, 128], sizes = [8, 128], strides = [1, 1]} : vector<8x512xf32> to vector<8x128xf32>
    %179 = vector.extract_strided_slice %176 {offsets = [0, 256], sizes = [8, 128], strides = [1, 1]} : vector<8x512xf32> to vector<8x128xf32>
    %180 = vector.extract_strided_slice %176 {offsets = [0, 384], sizes = [8, 128], strides = [1, 1]} : vector<8x512xf32> to vector<8x128xf32>
    %181 = arith.mulf %178, %160 : vector<8x128xf32>
    %182 = arith.mulf %177, %180 : vector<8x128xf32>
    %183 = arith.addf %181, %182 : vector<8x128xf32>
    %184 = math.tanh %183 : vector<8x128xf32>
    %185 = arith.mulf %179, %184 : vector<8x128xf32>
    %186 = arith.index_cast %c7_i32 : i32 to index
    %c0_52 = arith.constant 0 : index
    %c0_53 = arith.constant 0 : index
    %187 = vector.load %arg4[%186, %c0_52, %c0_53] : memref<8x8x128xf32, #tpu.memory_space<vmem>>, vector<1x8x128xf32>
    %188 = vector.shape_cast %187 : vector<1x8x128xf32> to vector<8x128xf32>
    %189 = vector.shape_cast %185 : vector<8x128xf32> to vector<1x8x128xf32>
    tpu.vector_store %arg4[%186, %c0_52, %c0_53], %189 {strides = array<i32>} : memref<8x8x128xf32, #tpu.memory_space<vmem>>, vector<1x8x128xf32>,
    %c8_i32 = arith.constant 8 : i32
    %c0_54 = arith.constant 0 : index
    %c0_55 = arith.constant 0 : index
    %190 = vector.load %arg5[%c0_54, %c0_55] : memref<8x128xf32, #tpu.memory_space<vmem>>, vector<8x128xf32>
    tpu.vector_store %arg5[%c0_54, %c0_55], %185 {strides = array<i32>} : memref<8x128xf32, #tpu.memory_space<vmem>>, vector<8x128xf32>,
    %c0_56 = arith.constant 0 : index
    %c0_57 = arith.constant 0 : index
    %191 = vector.load %arg6[%c0_56, %c0_57] : memref<8x128xf32, #tpu.memory_space<vmem>>, vector<8x128xf32>
    tpu.vector_store %arg6[%c0_56, %c0_57], %183 {strides = array<i32>} : memref<8x128xf32, #tpu.memory_space<vmem>>, vector<8x128xf32>,
    return
  }
  func.func @transform_0(%arg0: i32, %arg1: i32) -> (i32, i32, i32) {
    %c0_i32 = arith.constant 0 : i32
    %c0_i32_0 = arith.constant 0 : i32
    return %arg1, %arg0, %c0_i32 : i32, i32, i32
  }
  func.func @transform_1(%arg0: i32, %arg1: i32) -> (i32, i32) {
    %c0_i32 = arith.constant 0 : i32
    %c0_i32_0 = arith.constant 0 : i32
    %c0_i32_1 = arith.constant 0 : i32
    return %c0_i32, %c0_i32_0 : i32, i32
  }
  func.func @transform_2(%arg0: i32, %arg1: i32) -> (i32, i32, i32) {
    %c0_i32 = arith.constant 0 : i32
    %c0_i32_0 = arith.constant 0 : i32
    return %arg1, %arg0, %c0_i32 : i32, i32, i32
  }
}

</mosaic_0001>

<llo_original>
// kernel: tpu_custom_call.1
$region0: #{tpu_custom_call.1}
  #allocation0 [shape = 'u32[]', space=smem, size = 0x4, offset = 0x4, fixed_abs, tag = 'smem constant byte address 0x4 - core index']
  #allocation1 [shape = 'u32[144,128]{1,0:T(1,128)}', space=vmem, size = 0x12000, scoped, tag = 'internal scratch']
  #allocation2 [shape = 'f32[8,128]{1,0:T(8,128)}', space=vmem, size = 0x1000, scoped, tag = 'scratch operand']
  #allocation3 [shape = 'f32[8,128]{1,0:T(8,128)}', space=vmem, size = 0x1000, scoped, tag = 'scratch operand']
  %s0 = inlined_call_operand.hbm [shape: f32[8,8,512], index: 0, kind: input, shape index: {}]
  %s1 = inlined_call_operand.hbm [shape: f32[128,512], index: 1, kind: input, shape index: {}]
  %s2 = inlined_call_operand.hbm [shape: f32[8,8,128], index: 2, kind: output, shape index: {}]
  %s3 = sld [smem:[#allocation0]]
  $region30: #{tpu_custom_call.1} parent=0
    _
  %s5 = ssub.s32 1, %s3
  %s6 = scalar_select 0, %s5, %s3
  $region1: #{tpu_custom_call.1} parent=0
    #allocation4 [shape = 'u8[131072]{0}', space=vmem, size = 0x20000, scoped, tag = 'input window, operand 0, single buffered']
    #allocation5 [shape = 's32[1]{0}', space=sflag, size = 0x4, scoped, tag = 'scoped memory for tpu_custom_call.1']
    #allocation6 [shape = 's32[1]{0}', space=sflag, size = 0x4, scoped, tag = 'scoped memory for tpu_custom_call.1']
    #allocation7 [shape = 'u8[262144]{0}', space=vmem, size = 0x40000, scoped, tag = 'input window, operand 1, single buffered']
    #allocation8 [shape = 's32[1]{0}', space=sflag, size = 0x4, scoped, tag = 'scoped memory for tpu_custom_call.1']
    #allocation9 [shape = 'u8[32768]{0}', space=vmem, size = 0x8000, scoped, tag = 'output window, operand 0, single buffered']
    %7 = vsyncpa [#allocation5], 0
    %8 = vsyncpa [#allocation8], 0
    %9 = vsyncpa [#allocation6], 0
    // Predicated region
    $region2: #{tpu_custom_call.1} parent=1 // pred_check
      _
    $region3: #{tpu_custom_call.1} parent=1 // pred_check_branch
      %11 = sbr.rel (0) target = $region5
    $region4: #{tpu_custom_call.1} parent=1 // pred_region
      %s13 = ssub.s32 4096, 4096
      %14 = vsyncadd [#allocation5], %s13
      %s15 = sshll.u32 [#allocation4], 4
      %s16 = int_to_ptr.vmem [resolvable:$true] %s15
      %21 = dma.hbm_to_vmem [thread:$0]  %s0, 4096, %s16, [#allocation5], 512, 512, 32
    $region5: #{tpu_custom_call.1} parent=1 // pred_fallthru
      _
    // Predicated region
    $region6: #{tpu_custom_call.1} parent=1 // pred_check
      _
    $region7: #{tpu_custom_call.1} parent=1 // pred_check_branch
      %23 = sbr.rel (0) target = $region9
    $region8: #{tpu_custom_call.1} parent=1 // pred_region
      %s25 = ssub.s32 8192, 8192
      %26 = vsyncadd [#allocation8], %s25
      %s27 = sshll.u32 [#allocation7], 4
      %s28 = int_to_ptr.vmem [resolvable:$true] %s27
      %33 = dma.hbm_to_vmem [thread:$0]  %s1, 8192, %s28, [#allocation8], 512, 512, 32
    $region9: #{tpu_custom_call.1} parent=1 // pred_fallthru
      _
    // Predicated region
    $region10: #{tpu_custom_call.1} parent=1 // pred_check
      _
    $region11: #{tpu_custom_call.1} parent=1 // pred_check_branch
      %35 = sbr.rel (0) target = $region13
    $region12: #{tpu_custom_call.1} parent=1 // pred_region
      %36 = dma.done [#allocation5], 4096
    $region13: #{tpu_custom_call.1} parent=1 // pred_fallthru
      _
    // Predicated region
    $region14: #{tpu_custom_call.1} parent=1 // pred_check
      _
    $region15: #{tpu_custom_call.1} parent=1 // pred_check_branch
      %38 = sbr.rel (0) target = $region17
    $region16: #{tpu_custom_call.1} parent=1 // pred_region
      %39 = dma.done [#allocation8], 8192
    $region17: #{tpu_custom_call.1} parent=1 // pred_fallthru
      _
    %p40 = scmp.eq.s32.totalorder 0, 0
    // Predicated region
    $region18: #{tpu_custom_call.1} parent=1 // pred_check
      %p41 = pneg %p40
    $region19: #{tpu_custom_call.1} parent=1 // pred_check_branch
      %43 = sbr.rel (%p41) target = $region21
    $region20: #{tpu_custom_call.1} parent=1 // pred_region
      %44 = vst [vmem:[#allocation2] sm:$0xff] 0.0
      %45 = vst [vmem:[#allocation3] sm:$0xff] 1.0
    $region21: #{tpu_custom_call.1} parent=1 // pred_fallthru
      _
    %v46 = vld [vmem:[#allocation7] sm:$0xff]
    %v47 = vld [vmem:[#allocation7 + $0x8] sm:$0xff]
    %v48 = vld [vmem:[#allocation7 + $0x10] sm:$0xff]
    %v49 = vld [vmem:[#allocation7 + $0x18] sm:$0xff]
    %v50 = vld [vmem:[#allocation7 + $0x20] sm:$0xff]
    %v51 = vld [vmem:[#allocation7 + $0x28] sm:$0xff]
    %v52 = vld [vmem:[#allocation7 + $0x30] sm:$0xff]
    %v53 = vld [vmem:[#allocation7 + $0x38] sm:$0xff]
    %v54 = vld [vmem:[#allocation7 + $0x40] sm:$0xff]
    %v55 = vld [vmem:[#allocation7 + $0x48] sm:$0xff]
    %v56 = vld [vmem:[#allocation7 + $0x50] sm:$0xff]
    %v57 = vld [vmem:[#allocation7 + $0x58] sm:$0xff]
    %v58 = vld [vmem:[#allocation7 + $0x60] sm:$0xff]
    %v59 = vld [vmem:[#allocation7 + $0x68] sm:$0xff]
    %v60 = vld [vmem:[#allocation7 + $0x70] sm:$0xff]
    %v61 = vld [vmem:[#allocation7 + $0x78] sm:$0xff]
    %v62 = vld [vmem:[#allocation7 + $0x80] sm:$0xff]
    %v63 = vld [vmem:[#allocation7 + $0x88] sm:$0xff]
    %v64 = vld [vmem:[#allocation7 + $0x90] sm:$0xff]
    %v65 = vld [vmem:[#allocation7 + $0x98] sm:$0xff]
    %v66 = vld [vmem:[#allocation7 + $0xa0] sm:$0xff]
    %v67 = vld [vmem:[#allocation7 + $0xa8] sm:$0xff]
    %v68 = vld [vmem:[#allocation7 + $0xb0] sm:$0xff]
    %v69 = vld [vmem:[#allocation7 + $0xb8] sm:$0xff]
    %v70 = vld [vmem:[#allocation7 + $0xc0] sm:$0xff]
    %v71 = vld [vmem:[#allocation7 + $0xc8] sm:$0xff]
    %v72 = vld [vmem:[#allocation7 + $0xd0] sm:$0xff]
    %v73 = vld [vmem:[#allocation7 + $0xd8] sm:$0xff]
    %v74 = vld [vmem:[#allocation7 + $0xe0] sm:$0xff]
    %v75 = vld [vmem:[#allocation7 + $0xe8] sm:$0xff]
    %v76 = vld [vmem:[#allocation7 + $0xf0] sm:$0xff]
    %v77 = vld [vmem:[#allocation7 + $0xf8] sm:$0xff]
    %v78 = vld [vmem:[#allocation7 + $0x100] sm:$0xff]
    %v79 = vld [vmem:[#allocation7 + $0x108] sm:$0xff]
    %v80 = vld [vmem:[#allocation7 + $0x110] sm:$0xff]
    %v81 = vld [vmem:[#allocation7 + $0x118] sm:$0xff]
    %v82 = vld [vmem:[#allocation7 + $0x120] sm:$0xff]
    %v83 = vld [vmem:[#allocation7 + $0x128] sm:$0xff]
    %v84 = vld [vmem:[#allocation7 + $0x130] sm:$0xff]
    %v85 = vld [vmem:[#allocation7 + $0x138] sm:$0xff]
    %v86 = vld [vmem:[#allocation7 + $0x140] sm:$0xff]
    %v87 = vld [vmem:[#allocation7 + $0x148] sm:$0xff]
    %v88 = vld [vmem:[#allocation7 + $0x150] sm:$0xff]
    %v89 = vld [vmem:[#allocation7 + $0x158] sm:$0xff]
    %v90 = vld [vmem:[#allocation7 + $0x160] sm:$0xff]
    %v91 = vld [vmem:[#allocation7 + $0x168] sm:$0xff]
    %v92 = vld [vmem:[#allocation7 + $0x170] sm:$0xff]
    %v93 = vld [vmem:[#allocation7 + $0x178] sm:$0xff]
    %v94 = vld [vmem:[#allocation7 + $0x180] sm:$0xff]
    %v95 = vld [vmem:[#allocation7 + $0x188] sm:$0xff]
    %v96 = vld [vmem:[#allocation7 + $0x190] sm:$0xff]
    %v97 = vld [vmem:[#allocation7 + $0x198] sm:$0xff]
    %v98 = vld [vmem:[#allocation7 + $0x1a0] sm:$0xff]
    %v99 = vld [vmem:[#allocation7 + $0x1a8] sm:$0xff]
    %v100 = vld [vmem:[#allocation7 + $0x1b0] sm:$0xff]
    %v101 = vld [vmem:[#allocation7 + $0x1b8] sm:$0xff]
    %v102 = vld [vmem:[#allocation7 + $0x1c0] sm:$0xff]
    %v103 = vld [vmem:[#allocation7 + $0x1c8] sm:$0xff]
    %v104 = vld [vmem:[#allocation7 + $0x1d0] sm:$0xff]
    %v105 = vld [vmem:[#allocation7 + $0x1d8] sm:$0xff]
    %v106 = vld [vmem:[#allocation7 + $0x1e0] sm:$0xff]
    %v107 = vld [vmem:[#allocation7 + $0x1e8] sm:$0xff]
    %v108 = vld [vmem:[#allocation7 + $0x1f0] sm:$0xff]
    %v109 = vld [vmem:[#allocation7 + $0x1f8] sm:$0xff]
    %v110 = vld [vmem:[#allocation2] sm:$0xff]
    %v111 = vld [vmem:[#allocation3] sm:$0xff]
    %v112 = vld [vmem:[#allocation4] sm:$0xff]
    %v113 = vld [vmem:[#allocation4 + $0x8] sm:$0xff]
    %v114 = vld [vmem:[#allocation4 + $0x10] sm:$0xff]
    %v115 = vld [vmem:[#allocation4 + $0x18] sm:$0xff]
    %116 = vmatprep.subr.mxu0 %v47
    %117 = vmatpush1.msra.mxu0 %v46
    %118 = vmatprep.subr.mxu0 %v51
    %119 = vmatpush1.msra.mxu0 %v50
    %120 = vmatprep.subr.mxu0 %v55
    %121 = vmatpush1.msra.mxu0 %v54
    %122 = vmatprep.subr.mxu0 %v59
    %123 = vmatpush1.msra.mxu0 %v58
    %124 = vmatprep.subr.mxu0 %v63
    %125 = vmatpush1.msra.mxu0 %v62
    %126 = vmatprep.subr.mxu0 %v67
    %127 = vmatpush1.msra.mxu0 %v66
    %128 = vmatprep.subr.mxu0 %v71
    %129 = vmatpush1.msra.mxu0 %v70
    %130 = vmatprep.subr.mxu0 %v75
    %131 = vmatpush1.msra.mxu0 %v74
    %132 = vmatprep.subr.mxu0 %v79
    %133 = vmatpush1.msra.mxu0 %v78
    %134 = vmatprep.subr.mxu0 %v83
    %135 = vmatpush1.msra.mxu0 %v82
    %136 = vmatprep.subr.mxu0 %v87
    %137 = vmatpush1.msra.mxu0 %v86
    %138 = vmatprep.subr.mxu0 %v91
    %139 = vmatpush1.msra.mxu0 %v90
    %140 = vmatprep.subr.mxu0 %v95
    %141 = vmatpush1.msra.mxu0 %v94
    %142 = vmatprep.subr.mxu0 %v99
    %143 = vmatpush1.msra.mxu0 %v98
    %144 = vmatprep.subr.mxu0 %v103
    %145 = vmatpush1.msra.mxu0 %v102
    %146 = vmatprep.subr.mxu0 %v107
    %147 = vmatpush1.msra.mxu0 %v106
    %148 = vmatprep.subr.mxu0 0.0
    %149 = vmatpush1.msra.mxu0 0.0
    %150 = vmatprep.subr.mxu0 0.0
    %151 = vmatpush1.msra.mxu0 0.0
    %152 = vmatprep.subr.mxu0 0.0
    %153 = vmatpush1.msra.mxu0 0.0
    %154 = vmatprep.subr.mxu0 0.0
    %155 = vmatpush1.msra.mxu0 0.0
    %156 = vmatprep.subr.mxu0 0.0
    %157 = vmatpush1.msra.mxu0 0.0
    %158 = vmatprep.subr.mxu0 0.0
    %159 = vmatpush1.msra.mxu0 0.0
    %160 = vmatprep.subr.mxu0 0.0
    %161 = vmatpush1.msra.mxu0 0.0
    %162 = vmatprep.subr.mxu0 0.0
    %163 = vmatpush1.msra.mxu0 0.0
    %164 = vmatprep.subr.mxu0 0.0
    %165 = vmatpush1.msra.mxu0 0.0
    %166 = vmatprep.subr.mxu0 0.0
    %167 = vmatpush1.msra.mxu0 0.0
    %168 = vmatprep.subr.mxu0 0.0
    %169 = vmatpush1.msra.mxu0 0.0
    %170 = vmatprep.subr.mxu0 0.0
    %171 = vmatpush1.msra.mxu0 0.0
    %172 = vmatprep.subr.mxu0 0.0
    %173 = vmatpush1.msra.mxu0 0.0
    %174 = vmatprep.subr.mxu0 0.0
    %175 = vmatpush1.msra.mxu0 0.0
    %176 = vmatprep.subr.mxu0 0.0
    %177 = vmatpush1.msra.mxu0 0.0
    %178 = vmatprep.subr.mxu0 0.0
    %179 = vmatpush1.msra.mxu0 0.0
    %180 = vmatprep.mubr.f32.mxu0 0.0
    %181 = vmatmul.mubr.f32.gmra.mrb[0].mxu0 %v110
    %v182 = vpop.f32.mrb[0].mxu0
    %v183 = vadd.f32 %v112, %v182
    %v184 = vpop.f32.mrb[0].mxu0
    %v185 = vadd.f32 %v113, %v184
    %186 = vdwg.mxu0
    %187 = vmatprep.subr.mxu0 %v49
    %188 = vmatpush1.msra.mxu0 %v48
    %189 = vmatprep.subr.mxu0 %v53
    %190 = vmatpush1.msra.mxu0 %v52
    %191 = vmatprep.subr.mxu0 %v57
    %192 = vmatpush1.msra.mxu0 %v56
    %193 = vmatprep.subr.mxu0 %v61
    %194 = vmatpush1.msra.mxu0 %v60
    %195 = vmatprep.subr.mxu0 %v65
    %196 = vmatpush1.msra.mxu0 %v64
    %197 = vmatprep.subr.mxu0 %v69
    %198 = vmatpush1.msra.mxu0 %v68
    %199 = vmatprep.subr.mxu0 %v73
    %200 = vmatpush1.msra.mxu0 %v72
    %201 = vmatprep.subr.mxu0 %v77
    %202 = vmatpush1.msra.mxu0 %v76
    %203 = vmatprep.subr.mxu0 %v81
    %204 = vmatpush1.msra.mxu0 %v80
    %205 = vmatprep.subr.mxu0 %v85
    %206 = vmatpush1.msra.mxu0 %v84
    %207 = vmatprep.subr.mxu0 %v89
    %208 = vmatpush1.msra.mxu0 %v88
    %209 = vmatprep.subr.mxu0 %v93
    %210 = vmatpush1.msra.mxu0 %v92
    %211 = vmatprep.subr.mxu0 %v97
    %212 = vmatpush1.msra.mxu0 %v96
    %213 = vmatprep.subr.mxu0 %v101
    %214 = vmatpush1.msra.mxu0 %v100
    %215 = vmatprep.subr.mxu0 %v105
    %216 = vmatpush1.msra.mxu0 %v104
    %217 = vmatprep.subr.mxu0 %v109
    %218 = vmatpush1.msra.mxu0 %v108
    %219 = vmatprep.subr.mxu0 0.0
    %220 = vmatpush1.msra.mxu0 0.0
    %221 = vmatprep.subr.mxu0 0.0
    %222 = vmatpush1.msra.mxu0 0.0
    %223 = vmatprep.subr.mxu0 0.0
    %224 = vmatpush1.msra.mxu0 0.0
    %225 = vmatprep.subr.mxu0 0.0
    %226 = vmatpush1.msra.mxu0 0.0
    %227 = vmatprep.subr.mxu0 0.0
    %228 = vmatpush1.msra.mxu0 0.0
    %229 = vmatprep.subr.mxu0 0.0
    %230 = vmatpush1.msra.mxu0 0.0
    %231 = vmatprep.subr.mxu0 0.0
    %232 = vmatpush1.msra.mxu0 0.0
    %233 = vmatprep.subr.mxu0 0.0
    %234 = vmatpush1.msra.mxu0 0.0
    %235 = vmatprep.subr.mxu0 0.0
    %236 = vmatpush1.msra.mxu0 0.0
    %237 = vmatprep.subr.mxu0 0.0
    %238 = vmatpush1.msra.mxu0 0.0
    %239 = vmatprep.subr.mxu0 0.0
    %240 = vmatpush1.msra.mxu0 0.0
    %241 = vmatprep.subr.mxu0 0.0
    %242 = vmatpush1.msra.mxu0 0.0
    %243 = vmatprep.subr.mxu0 0.0
    %244 = vmatpush1.msra.mxu0 0.0
    %245 = vmatprep.subr.mxu0 0.0
    %246 = vmatpush1.msra.mxu0 0.0
    %247 = vmatprep.subr.mxu0 0.0
    %248 = vmatpush1.msra.mxu0 0.0
    %249 = vmatprep.subr.mxu0 0.0
    %250 = vmatpush1.msra.mxu0 0.0
    %251 = vmatprep.mubr.f32.mxu0 0.0
    %252 = vmatmul.mubr.f32.gmra.mrb[0].mxu0 %v110
    %v253 = vpop.f32.mrb[0].mxu0
    %v254 = vadd.f32 %v114, %v253
    %v255 = vpop.f32.mrb[0].mxu0
    %v256 = vadd.f32 %v115, %v255
    %257 = vdwg.mxu0
    %v258 = vxor.u32 %v183, 2147483648
    %v259 = vxor.u32 %v185, 2147483648
    %v260 = vxor.u32 %v254, 2147483648
    %v261 = vxor.u32 %v256, 2147483648
    %v262 = vmul.f32 %v258, 1.442695
    %v263 = vpow.pop %v262
    %v264 = vmul.f32 %v259, 1.442695
    %v265 = vpow.pop %v264
    %v266 = vmul.f32 %v260, 1.442695
    %v267 = vpow.pop %v266
    %v268 = vmul.f32 %v261, 1.442695
    %v269 = vpow.pop %v268
    %v270 = vadd.f32 %v263, 1.0
    %v271 = vadd.f32 %v265, 1.0
    %v272 = vadd.f32 %v267, 1.0
    %v273 = vadd.f32 %v269, 1.0
    %v274 = vrcp.pop %v270
    %v275 = vmul.f32 1.0, %v274
    %v276 = vrcp.pop %v271
    %v277 = vmul.f32 1.0, %v276
    %v278 = vrcp.pop %v272
    %v279 = vmul.f32 1.0, %v278
    %v280 = vrcp.pop %v273
    %v281 = vmul.f32 1.0, %v280
    %v282 = vmul.f32 %v277, %v111
    %v283 = vmul.f32 %v275, %v281
    %v284 = vadd.f32 %v282, %v283
    %v285 = vtanh.pop %v284
    %v286 = vmul.f32 %v279, %v285
    %287 = vst [vmem:[#allocation9] sm:$0xff] %v286
    %s288 = scalar_lea.vmem [#allocation4], 32
    %v289 = vld [vmem:[%s288] sm:$0xff]
    %v290 = vld [vmem:[%s288 + $0x8] sm:$0xff]
    %v291 = vld [vmem:[%s288 + $0x10] sm:$0xff]
    %v292 = vld [vmem:[%s288 + $0x18] sm:$0xff]
    %293 = vmatprep.subr.mxu0 %v47
    %294 = vmatpush1.msra.mxu0 %v46
    %295 = vmatprep.subr.mxu0 %v51
    %296 = vmatpush1.msra.mxu0 %v50
    %297 = vmatprep.subr.mxu0 %v55
    %298 = vmatpush1.msra.mxu0 %v54
    %299 = vmatprep.subr.mxu0 %v59
    %300 = vmatpush1.msra.mxu0 %v58
    %301 = vmatprep.subr.mxu0 %v63
    %302 = vmatpush1.msra.mxu0 %v62
    %303 = vmatprep.subr.mxu0 %v67
    %304 = vmatpush1.msra.mxu0 %v66
    %305 = vmatprep.subr.mxu0 %v71
    %306 = vmatpush1.msra.mxu0 %v70
    %307 = vmatprep.subr.mxu0 %v75
    %308 = vmatpush1.msra.mxu0 %v74
    %309 = vmatprep.subr.mxu0 %v79
    %310 = vmatpush1.msra.mxu0 %v78
    %311 = vmatprep.subr.mxu0 %v83
    %312 = vmatpush1.msra.mxu0 %v82
    %313 = vmatprep.subr.mxu0 %v87
    %314 = vmatpush1.msra.mxu0 %v86
    %315 = vmatprep.subr.mxu0 %v91
    %316 = vmatpush1.msra.mxu0 %v90
    %317 = vmatprep.subr.mxu0 %v95
    %318 = vmatpush1.msra.mxu0 %v94
    %319 = vmatprep.subr.mxu0 %v99
    %320 = vmatpush1.msra.mxu0 %v98
    %321 = vmatprep.subr.mxu0 %v103
    %322 = vmatpush1.msra.mxu0 %v102
    %323 = vmatprep.subr.mxu0 %v107
    %324 = vmatpush1.msra.mxu0 %v106
    %325 = vmatprep.subr.mxu0 0.0
    %326 = vmatpush1.msra.mxu0 0.0
    %327 = vmatprep.subr.mxu0 0.0
    %328 = vmatpush1.msra.mxu0 0.0
    %329 = vmatprep.subr.mxu0 0.0
    %330 = vmatpush1.msra.mxu0 0.0
    %331 = vmatprep.subr.mxu0 0.0
    %332 = vmatpush1.msra.mxu0 0.0
    %333 = vmatprep.subr.mxu0 0.0
    %334 = vmatpush1.msra.mxu0 0.0
    %335 = vmatprep.subr.mxu0 0.0
    %336 = vmatpush1.msra.mxu0 0.0
    %337 = vmatprep.subr.mxu0 0.0
    %338 = vmatpush1.msra.mxu0 0.0
    %339 = vmatprep.subr.mxu0 0.0
    %340 = vmatpush1.msra.mxu0 0.0
    %341 = vmatprep.subr.mxu0 0.0
    %342 = vmatpush1.msra.mxu0 0.0
    %343 = vmatprep.subr.mxu0 0.0
    %344 = vmatpush1.msra.mxu0 0.0
    %345 = vmatprep.subr.mxu0 0.0
    %346 = vmatpush1.msra.mxu0 0.0
    %347 = vmatprep.subr.mxu0 0.0
    %348 = vmatpush1.msra.mxu0 0.0
    %349 = vmatprep.subr.mxu0 0.0
    %350 = vmatpush1.msra.mxu0 0.0
    %351 = vmatprep.subr.mxu0 0.0
    %352 = vmatpush1.msra.mxu0 0.0
    %353 = vmatprep.subr.mxu0 0.0
    %354 = vmatpush1.msra.mxu0 0.0
    %355 = vmatprep.subr.mxu0 0.0
    %356 = vmatpush1.msra.mxu0 0.0
    %357 = vmatprep.mubr.f32.mxu0 0.0
    %358 = vmatmul.mubr.f32.gmra.mrb[0].mxu0 %v286
    %v359 = vpop.f32.mrb[0].mxu0
    %v360 = vadd.f32 %v289, %v359
    %v361 = vpop.f32.mrb[0].mxu0
    %v362 = vadd.f32 %v290, %v361
    %363 = vdwg.mxu0
    %364 = vmatprep.subr.mxu0 %v49
    %365 = vmatpush1.msra.mxu0 %v48
    %366 = vmatprep.subr.mxu0 %v53
    %367 = vmatpush1.msra.mxu0 %v52
    %368 = vmatprep.subr.mxu0 %v57
    %369 = vmatpush1.msra.mxu0 %v56
    %370 = vmatprep.subr.mxu0 %v61
    %371 = vmatpush1.msra.mxu0 %v60
    %372 = vmatprep.subr.mxu0 %v65
    %373 = vmatpush1.msra.mxu0 %v64
    %374 = vmatprep.subr.mxu0 %v69
    %375 = vmatpush1.msra.mxu0 %v68
    %376 = vmatprep.subr.mxu0 %v73
    %377 = vmatpush1.msra.mxu0 %v72
    %378 = vmatprep.subr.mxu0 %v77
    %379 = vmatpush1.msra.mxu0 %v76
    %380 = vmatprep.subr.mxu0 %v81
    %381 = vmatpush1.msra.mxu0 %v80
    %382 = vmatprep.subr.mxu0 %v85
    %383 = vmatpush1.msra.mxu0 %v84
    %384 = vmatprep.subr.mxu0 %v89
    %385 = vmatpush1.msra.mxu0 %v88
    %386 = vmatprep.subr.mxu0 %v93
    %387 = vmatpush1.msra.mxu0 %v92
    %388 = vmatprep.subr.mxu0 %v97
    %389 = vmatpush1.msra.mxu0 %v96
    %390 = vmatprep.subr.mxu0 %v101
    %391 = vmatpush1.msra.mxu0 %v100
    %392 = vmatprep.subr.mxu0 %v105
    %393 = vmatpush1.msra.mxu0 %v104
    %394 = vmatprep.subr.mxu0 %v109
    %395 = vmatpush1.msra.mxu0 %v108
    %396 = vmatprep.subr.mxu0 0.0
    %397 = vmatpush1.msra.mxu0 0.0
    %398 = vmatprep.subr.mxu0 0.0
    %399 = vmatpush1.msra.mxu0 0.0
    %400 = vmatprep.subr.mxu0 0.0
    %401 = vmatpush1.msra.mxu0 0.0
    %402 = vmatprep.subr.mxu0 0.0
    %403 = vmatpush1.msra.mxu0 0.0
    %404 = vmatprep.subr.mxu0 0.0
    %405 = vmatpush1.msra.mxu0 0.0
    %406 = vmatprep.subr.mxu0 0.0
    %407 = vmatpush1.msra.mxu0 0.0
    %408 = vmatprep.subr.mxu0 0.0
    %409 = vmatpush1.msra.mxu0 0.0
    %410 = vmatprep.subr.mxu0 0.0
    %411 = vmatpush1.msra.mxu0 0.0
    %412 = vmatprep.subr.mxu0 0.0
    %413 = vmatpush1.msra.mxu0 0.0
    %414 = vmatprep.subr.mxu0 0.0
    %415 = vmatpush1.msra.mxu0 0.0
    %416 = vmatprep.subr.mxu0 0.0
    %417 = vmatpush1.msra.mxu0 0.0
    %418 = vmatprep.subr.mxu0 0.0
    %419 = vmatpush1.msra.mxu0 0.0
    %420 = vmatprep.subr.mxu0 0.0
    %421 = vmatpush1.msra.mxu0 0.0
    %422 = vmatprep.subr.mxu0 0.0
    %423 = vmatpush1.msra.mxu0 0.0
    %424 = vmatprep.subr.mxu0 0.0
    %425 = vmatpush1.msra.mxu0 0.0
    %426 = vmatprep.subr.mxu0 0.0
    %427 = vmatpush1.msra.mxu0 0.0
    %428 = vmatprep.mubr.f32.mxu0 0.0
    %429 = vmatmul.mubr.f32.gmra.mrb[0].mxu0 %v286
    %v430 = vpop.f32.mrb[0].mxu0
    %v431 = vadd.f32 %v291, %v430
    %v432 = vpop.f32.mrb[0].mxu0
    %v433 = vadd.f32 %v292, %v432
    %434 = vdwg.mxu0
    %v435 = vxor.u32 %v360, 2147483648
    %v436 = vxor.u32 %v362, 2147483648
    %v437 = vxor.u32 %v431, 2147483648
    %v438 = vxor.u32 %v433, 2147483648
    %v439 = vmul.f32 %v435, 1.442695
    %v440 = vpow.pop %v439
    %v441 = vmul.f32 %v436, 1.442695
    %v442 = vpow.pop %v441
    %v443 = vmul.f32 %v437, 1.442695
    %v444 = vpow.pop %v443
    %v445 = vmul.f32 %v438, 1.442695
    %v446 = vpow.pop %v445
    %v447 = vadd.f32 %v440, 1.0
    %v448 = vadd.f32 %v442, 1.0
    %v449 = vadd.f32 %v444, 1.0
    %v450 = vadd.f32 %v446, 1.0
    %v451 = vrcp.pop %v447
    %v452 = vmul.f32 1.0, %v451
    %v453 = vrcp.pop %v448
    %v454 = vmul.f32 1.0, %v453
    %v455 = vrcp.pop %v449
    %v456 = vmul.f32 1.0, %v455
    %v457 = vrcp.pop %v450
    %v458 = vmul.f32 1.0, %v457
    %v459 = vmul.f32 %v454, %v284
    %v460 = vmul.f32 %v452, %v458
    %v461 = vadd.f32 %v459, %v460
    %v462 = vtanh.pop %v461
    %v463 = vmul.f32 %v456, %v462
    %s464 = scalar_lea.vmem [#allocation9], 8
    %465 = vst [vmem:[%s464] sm:$0xff] %v463
    %s466 = scalar_lea.vmem [#allocation4], 64
    %v467 = vld [vmem:[%s466] sm:$0xff]
    %v468 = vld [vmem:[%s466 + $0x8] sm:$0xff]
    %v469 = vld [vmem:[%s466 + $0x10] sm:$0xff]
    %v470 = vld [vmem:[%s466 + $0x18] sm:$0xff]
    %471 = vmatprep.subr.mxu0 %v47
    %472 = vmatpush1.msra.mxu0 %v46
    %473 = vmatprep.subr.mxu0 %v51
    %474 = vmatpush1.msra.mxu0 %v50
    %475 = vmatprep.subr.mxu0 %v55
    %476 = vmatpush1.msra.mxu0 %v54
    %477 = vmatprep.subr.mxu0 %v59
    %478 = vmatpush1.msra.mxu0 %v58
    %479 = vmatprep.subr.mxu0 %v63
    %480 = vmatpush1.msra.mxu0 %v62
    %481 = vmatprep.subr.mxu0 %v67
    %482 = vmatpush1.msra.mxu0 %v66
    %483 = vmatprep.subr.mxu0 %v71
    %484 = vmatpush1.msra.mxu0 %v70
    %485 = vmatprep.subr.mxu0 %v75
    %486 = vmatpush1.msra.mxu0 %v74
    %487 = vmatprep.subr.mxu0 %v79
    %488 = vmatpush1.msra.mxu0 %v78
    %489 = vmatprep.subr.mxu0 %v83
    %490 = vmatpush1.msra.mxu0 %v82
    %491 = vmatprep.subr.mxu0 %v87
    %492 = vmatpush1.msra.mxu0 %v86
    %493 = vmatprep.subr.mxu0 %v91
    %494 = vmatpush1.msra.mxu0 %v90
    %495 = vmatprep.subr.mxu0 %v95
    %496 = vmatpush1.msra.mxu0 %v94
    %497 = vmatprep.subr.mxu0 %v99
    %498 = vmatpush1.msra.mxu0 %v98
    %499 = vmatprep.subr.mxu0 %v103
    %500 = vmatpush1.msra.mxu0 %v102
    %501 = vmatprep.subr.mxu0 %v107
    %502 = vmatpush1.msra.mxu0 %v106
    %503 = vmatprep.subr.mxu0 0.0
    %504 = vmatpush1.msra.mxu0 0.0
    %505 = vmatprep.subr.mxu0 0.0
    %506 = vmatpush1.msra.mxu0 0.0
    %507 = vmatprep.subr.mxu0 0.0
    %508 = vmatpush1.msra.mxu0 0.0
    %509 = vmatprep.subr.mxu0 0.0
    %510 = vmatpush1.msra.mxu0 0.0
    %511 = vmatprep.subr.mxu0 0.0
    %512 = vmatpush1.msra.mxu0 0.0
    %513 = vmatprep.subr.mxu0 0.0
    %514 = vmatpush1.msra.mxu0 0.0
    %515 = vmatprep.subr.mxu0 0.0
    %516 = vmatpush1.msra.mxu0 0.0
    %517 = vmatprep.subr.mxu0 0.0
    %518 = vmatpush1.msra.mxu0 0.0
    %519 = vmatprep.subr.mxu0 0.0
    %520 = vmatpush1.msra.mxu0 0.0
    %521 = vmatprep.subr.mxu0 0.0
    %522 = vmatpush1.msra.mxu0 0.0
    %523 = vmatprep.subr.mxu0 0.0
    %524 = vmatpush1.msra.mxu0 0.0
    %525 = vmatprep.subr.mxu0 0.0
    %526 = vmatpush1.msra.mxu0 0.0
    %527 = vmatprep.subr.mxu0 0.0
    %528 = vmatpush1.msra.mxu0 0.0
    %529 = vmatprep.subr.mxu0 0.0
    %530 = vmatpush1.msra.mxu0 0.0
    %531 = vmatprep.subr.mxu0 0.0
    %532 = vmatpush1.msra.mxu0 0.0
    %533 = vmatprep.subr.mxu0 0.0
    %534 = vmatpush1.msra.mxu0 0.0
    %535 = vmatprep.mubr.f32.mxu0 0.0
    %536 = vmatmul.mubr.f32.gmra.mrb[0].mxu0 %v463
    %v537 = vpop.f32.mrb[0].mxu0
    %v538 = vadd.f32 %v467, %v537
    %v539 = vpop.f32.mrb[0].mxu0
    %v540 = vadd.f32 %v468, %v539
    %541 = vdwg.mxu0
    %542 = vmatprep.subr.mxu0 %v49
    %543 = vmatpush1.msra.mxu0 %v48
    %544 = vmatprep.subr.mxu0 %v53
    %545 = vmatpush1.msra.mxu0 %v52
    %546 = vmatprep.subr.mxu0 %v57
    %547 = vmatpush1.msra.mxu0 %v56
    %548 = vmatprep.subr.mxu0 %v61
    %549 = vmatpush1.msra.mxu0 %v60
    %550 = vmatprep.subr.mxu0 %v65
    %551 = vmatpush1.msra.mxu0 %v64
    %552 = vmatprep.subr.mxu0 %v69
    %553 = vmatpush1.msra.mxu0 %v68
    %554 = vmatprep.subr.mxu0 %v73
    %555 = vmatpush1.msra.mxu0 %v72
    %556 = vmatprep.subr.mxu0 %v77
    %557 = vmatpush1.msra.mxu0 %v76
    %558 = vmatprep.subr.mxu0 %v81
    %559 = vmatpush1.msra.mxu0 %v80
    %560 = vmatprep.subr.mxu0 %v85
    %561 = vmatpush1.msra.mxu0 %v84
    %562 = vmatprep.subr.mxu0 %v89
    %563 = vmatpush1.msra.mxu0 %v88
    %564 = vmatprep.subr.mxu0 %v93
    %565 = vmatpush1.msra.mxu0 %v92
    %566 = vmatprep.subr.mxu0 %v97
    %567 = vmatpush1.msra.mxu0 %v96
    %568 = vmatprep.subr.mxu0 %v101
    %569 = vmatpush1.msra.mxu0 %v100
    %570 = vmatprep.subr.mxu0 %v105
    %571 = vmatpush1.msra.mxu0 %v104
    %572 = vmatprep.subr.mxu0 %v109
    %573 = vmatpush1.msra.mxu0 %v108
    %574 = vmatprep.subr.mxu0 0.0
    %575 = vmatpush1.msra.mxu0 0.0
    %576 = vmatprep.subr.mxu0 0.0
    %577 = vmatpush1.msra.mxu0 0.0
    %578 = vmatprep.subr.mxu0 0.0
    %579 = vmatpush1.msra.mxu0 0.0
    %580 = vmatprep.subr.mxu0 0.0
    %581 = vmatpush1.msra.mxu0 0.0
    %582 = vmatprep.subr.mxu0 0.0
    %583 = vmatpush1.msra.mxu0 0.0
    %584 = vmatprep.subr.mxu0 0.0
    %585 = vmatpush1.msra.mxu0 0.0
    %586 = vmatprep.subr.mxu0 0.0
    %587 = vmatpush1.msra.mxu0 0.0
    %588 = vmatprep.subr.mxu0 0.0
    %589 = vmatpush1.msra.mxu0 0.0
    %590 = vmatprep.subr.mxu0 0.0
    %591 = vmatpush1.msra.mxu0 0.0
    %592 = vmatprep.subr.mxu0 0.0
    %593 = vmatpush1.msra.mxu0 0.0
    %594 = vmatprep.subr.mxu0 0.0
    %595 = vmatpush1.msra.mxu0 0.0
    %596 = vmatprep.subr.mxu0 0.0
    %597 = vmatpush1.msra.mxu0 0.0
    %598 = vmatprep.subr.mxu0 0.0
    %599 = vmatpush1.msra.mxu0 0.0
    %600 = vmatprep.subr.mxu0 0.0
    %601 = vmatpush1.msra.mxu0 0.0
    %602 = vmatprep.subr.mxu0 0.0
    %603 = vmatpush1.msra.mxu0 0.0
    %604 = vmatprep.subr.mxu0 0.0
    %605 = vmatpush1.msra.mxu0 0.0
    %606 = vmatprep.mubr.f32.mxu0 0.0
    %607 = vmatmul.mubr.f32.gmra.mrb[0].mxu0 %v463
    %v608 = vpop.f32.mrb[0].mxu0
    %v609 = vadd.f32 %v469, %v608
    %v610 = vpop.f32.mrb[0].mxu0
    %v611 = vadd.f32 %v470, %v610
    %612 = vdwg.mxu0
    %v613 = vxor.u32 %v538, 2147483648
    %v614 = vxor.u32 %v540, 2147483648
    %v615 = vxor.u32 %v609, 2147483648
    %v616 = vxor.u32 %v611, 2147483648
    %v617 = vmul.f32 %v613, 1.442695
    %v618 = vpow.pop %v617
    %v619 = vmul.f32 %v614, 1.442695
    %v620 = vpow.pop %v619
    %v621 = vmul.f32 %v615, 1.442695
    %v622 = vpow.pop %v621
    %v623 = vmul.f32 %v616, 1.442695
    %v624 = vpow.pop %v623
    %v625 = vadd.f32 %v618, 1.0
    %v626 = vadd.f32 %v620, 1.0
    %v627 = vadd.f32 %v622, 1.0
    %v628 = vadd.f32 %v624, 1.0
    %v629 = vrcp.pop %v625
    %v630 = vmul.f32 1.0, %v629
    %v631 = vrcp.pop %v626
    %v632 = vmul.f32 1.0, %v631
    %v633 = vrcp.pop %v627
    %v634 = vmul.f32 1.0, %v633
    %v635 = vrcp.pop %v628
    %v636 = vmul.f32 1.0, %v635
    %v637 = vmul.f32 %v632, %v461
    %v638 = vmul.f32 %v630, %v636
    %v639 = vadd.f32 %v637, %v638
    %v640 = vtanh.pop %v639
    %v641 = vmul.f32 %v634, %v640
    %s642 = scalar_lea.vmem [#allocation9], 16
    %643 = vst [vmem:[%s642] sm:$0xff] %v641
    %s644 = scalar_lea.vmem [#allocation4], 96
    %v645 = vld [vmem:[%s644] sm:$0xff]
    %v646 = vld [vmem:[%s644 + $0x8] sm:$0xff]
    %v647 = vld [vmem:[%s644 + $0x10] sm:$0xff]
    %v648 = vld [vmem:[%s644 + $0x18] sm:$0xff]
    %649 = vmatprep.subr.mxu0 %v47
    %650 = vmatpush1.msra.mxu0 %v46
    %651 = vmatprep.subr.mxu0 %v51
    %652 = vmatpush1.msra.mxu0 %v50
    %653 = vmatprep.subr.mxu0 %v55
    %654 = vmatpush1.msra.mxu0 %v54
    %655 = vmatprep.subr.mxu0 %v59
    %656 = vmatpush1.msra.mxu0 %v58
    %657 = vmatprep.subr.mxu0 %v63
    %658 = vmatpush1.msra.mxu0 %v62
    %659 = vmatprep.subr.mxu0 %v67
    %660 = vmatpush1.msra.mxu0 %v66
    %661 = vmatprep.subr.mxu0 %v71
    %662 = vmatpush1.msra.mxu0 %v70
    %663 = vmatprep.subr.mxu0 %v75
    %664 = vmatpush1.msra.mxu0 %v74
    %665 = vmatprep.subr.mxu0 %v79
    %666 = vmatpush1.msra.mxu0 %v78
    %667 = vmatprep.subr.mxu0 %v83
    %668 = vmatpush1.msra.mxu0 %v82
    %669 = vmatprep.subr.mxu0 %v87
    %670 = vmatpush1.msra.mxu0 %v86
    %671 = vmatprep.subr.mxu0 %v91
    %672 = vmatpush1.msra.mxu0 %v90
    %673 = vmatprep.subr.mxu0 %v95
    %674 = vmatpush1.msra.mxu0 %v94
    %675 = vmatprep.subr.mxu0 %v99
    %676 = vmatpush1.msra.mxu0 %v98
    %677 = vmatprep.subr.mxu0 %v103
    %678 = vmatpush1.msra.mxu0 %v102
    %679 = vmatprep.subr.mxu0 %v107
    %680 = vmatpush1.msra.mxu0 %v106
    %681 = vmatprep.subr.mxu0 0.0
    %682 = vmatpush1.msra.mxu0 0.0
    %683 = vmatprep.subr.mxu0 0.0
    %684 = vmatpush1.msra.mxu0 0.0
    %685 = vmatprep.subr.mxu0 0.0
    %686 = vmatpush1.msra.mxu0 0.0
    %687 = vmatprep.subr.mxu0 0.0
    %688 = vmatpush1.msra.mxu0 0.0
    %689 = vmatprep.subr.mxu0 0.0
    %690 = vmatpush1.msra.mxu0 0.0
    %691 = vmatprep.subr.mxu0 0.0
    %692 = vmatpush1.msra.mxu0 0.0
    %693 = vmatprep.subr.mxu0 0.0
    %694 = vmatpush1.msra.mxu0 0.0
    %695 = vmatprep.subr.mxu0 0.0
    %696 = vmatpush1.msra.mxu0 0.0
    %697 = vmatprep.subr.mxu0 0.0
    %698 = vmatpush1.msra.mxu0 0.0
    %699 = vmatprep.subr.mxu0 0.0
    %700 = vmatpush1.msra.mxu0 0.0
    %701 = vmatprep.subr.mxu0 0.0
    %702 = vmatpush1.msra.mxu0 0.0
    %703 = vmatprep.subr.mxu0 0.0
    %704 = vmatpush1.msra.mxu0 0.0
    %705 = vmatprep.subr.mxu0 0.0
    %706 = vmatpush1.msra.mxu0 0.0
    %707 = vmatprep.subr.mxu0 0.0
    %708 = vmatpush1.msra.mxu0 0.0
    %709 = vmatprep.subr.mxu0 0.0
    %710 = vmatpush1.msra.mxu0 0.0
    %711 = vmatprep.subr.mxu0 0.0
    %712 = vmatpush1.msra.mxu0 0.0
    %713 = vmatprep.mubr.f32.mxu0 0.0
    %714 = vmatmul.mubr.f32.gmra.mrb[0].mxu0 %v641
    %v715 = vpop.f32.mrb[0].mxu0
    %v716 = vadd.f32 %v645, %v715
    %v717 = vpop.f32.mrb[0].mxu0
    %v718 = vadd.f32 %v646, %v717
    %719 = vdwg.mxu0
    %720 = vmatprep.subr.mxu0 %v49
    %721 = vmatpush1.msra.mxu0 %v48
    %722 = vmatprep.subr.mxu0 %v53
    %723 = vmatpush1.msra.mxu0 %v52
    %724 = vmatprep.subr.mxu0 %v57
    %725 = vmatpush1.msra.mxu0 %v56
    %726 = vmatprep.subr.mxu0 %v61
    %727 = vmatpush1.msra.mxu0 %v60
    %728 = vmatprep.subr.mxu0 %v65
    %729 = vmatpush1.msra.mxu0 %v64
    %730 = vmatprep.subr.mxu0 %v69
    %731 = vmatpush1.msra.mxu0 %v68
    %732 = vmatprep.subr.mxu0 %v73
    %733 = vmatpush1.msra.mxu0 %v72
    %734 = vmatprep.subr.mxu0 %v77
    %735 = vmatpush1.msra.mxu0 %v76
    %736 = vmatprep.subr.mxu0 %v81
    %737 = vmatpush1.msra.mxu0 %v80
    %738 = vmatprep.subr.mxu0 %v85
    %739 = vmatpush1.msra.mxu0 %v84
    %740 = vmatprep.subr.mxu0 %v89
    %741 = vmatpush1.msra.mxu0 %v88
    %742 = vmatprep.subr.mxu0 %v93
    %743 = vmatpush1.msra.mxu0 %v92
    %744 = vmatprep.subr.mxu0 %v97
    %745 = vmatpush1.msra.mxu0 %v96
    %746 = vmatprep.subr.mxu0 %v101
    %747 = vmatpush1.msra.mxu0 %v100
    %748 = vmatprep.subr.mxu0 %v105
    %749 = vmatpush1.msra.mxu0 %v104
    %750 = vmatprep.subr.mxu0 %v109
    %751 = vmatpush1.msra.mxu0 %v108
    %752 = vmatprep.subr.mxu0 0.0
    %753 = vmatpush1.msra.mxu0 0.0
    %754 = vmatprep.subr.mxu0 0.0
    %755 = vmatpush1.msra.mxu0 0.0
    %756 = vmatprep.subr.mxu0 0.0
    %757 = vmatpush1.msra.mxu0 0.0
    %758 = vmatprep.subr.mxu0 0.0
    %759 = vmatpush1.msra.mxu0 0.0
    %760 = vmatprep.subr.mxu0 0.0
    %761 = vmatpush1.msra.mxu0 0.0
    %762 = vmatprep.subr.mxu0 0.0
    %763 = vmatpush1.msra.mxu0 0.0
    %764 = vmatprep.subr.mxu0 0.0
    %765 = vmatpush1.msra.mxu0 0.0
    %766 = vmatprep.subr.mxu0 0.0
    %767 = vmatpush1.msra.mxu0 0.0
    %768 = vmatprep.subr.mxu0 0.0
    %769 = vmatpush1.msra.mxu0 0.0
    %770 = vmatprep.subr.mxu0 0.0
    %771 = vmatpush1.msra.mxu0 0.0
    %772 = vmatprep.subr.mxu0 0.0
    %773 = vmatpush1.msra.mxu0 0.0
    %774 = vmatprep.subr.mxu0 0.0
    %775 = vmatpush1.msra.mxu0 0.0
    %776 = vmatprep.subr.mxu0 0.0
    %777 = vmatpush1.msra.mxu0 0.0
    %778 = vmatprep.subr.mxu0 0.0
    %779 = vmatpush1.msra.mxu0 0.0
    %780 = vmatprep.subr.mxu0 0.0
    %781 = vmatpush1.msra.mxu0 0.0
    %782 = vmatprep.subr.mxu0 0.0
    %783 = vmatpush1.msra.mxu0 0.0
    %784 = vmatprep.mubr.f32.mxu0 0.0
    %785 = vmatmul.mubr.f32.gmra.mrb[0].mxu0 %v641
    %v786 = vpop.f32.mrb[0].mxu0
    %v787 = vadd.f32 %v647, %v786
    %v788 = vpop.f32.mrb[0].mxu0
    %v789 = vadd.f32 %v648, %v788
    %790 = vdwg.mxu0
    %v791 = vxor.u32 %v716, 2147483648
    %v792 = vxor.u32 %v718, 2147483648
    %v793 = vxor.u32 %v787, 2147483648
    %v794 = vxor.u32 %v789, 2147483648
    %v795 = vmul.f32 %v791, 1.442695
    %v796 = vpow.pop %v795
    %v797 = vmul.f32 %v792, 1.442695
    %v798 = vpow.pop %v797
    %v799 = vmul.f32 %v793, 1.442695
    %v800 = vpow.pop %v799
    %v801 = vmul.f32 %v794, 1.442695
    %v802 = vpow.pop %v801
    %v803 = vadd.f32 %v796, 1.0
    %v804 = vadd.f32 %v798, 1.0
    %v805 = vadd.f32 %v800, 1.0
    %v806 = vadd.f32 %v802, 1.0
    %v807 = vrcp.pop %v803
    %v808 = vmul.f32 1.0, %v807
    %v809 = vrcp.pop %v804
    %v810 = vmul.f32 1.0, %v809
    %v811 = vrcp.pop %v805
    %v812 = vmul.f32 1.0, %v811
    %v813 = vrcp.pop %v806
    %v814 = vmul.f32 1.0, %v813
    %v815 = vmul.f32 %v810, %v639
    %v816 = vmul.f32 %v808, %v814
    %v817 = vadd.f32 %v815, %v816
    %v818 = vtanh.pop %v817
    %v819 = vmul.f32 %v812, %v818
    %s820 = scalar_lea.vmem [#allocation9], 24
    %821 = vst [vmem:[%s820] sm:$0xff] %v819
    %s822 = scalar_lea.vmem [#allocation4], 128
    %v823 = vld [vmem:[%s822] sm:$0xff]
    %v824 = vld [vmem:[%s822 + $0x8] sm:$0xff]
    %v825 = vld [vmem:[%s822 + $0x10] sm:$0xff]
    %v826 = vld [vmem:[%s822 + $0x18] sm:$0xff]
    %827 = vmatprep.subr.mxu0 %v47
    %828 = vmatpush1.msra.mxu0 %v46
    %829 = vmatprep.subr.mxu0 %v51
    %830 = vmatpush1.msra.mxu0 %v50
    %831 = vmatprep.subr.mxu0 %v55
    %832 = vmatpush1.msra.mxu0 %v54
    %833 = vmatprep.subr.mxu0 %v59
    %834 = vmatpush1.msra.mxu0 %v58
    %835 = vmatprep.subr.mxu0 %v63
    %836 = vmatpush1.msra.mxu0 %v62
    %837 = vmatprep.subr.mxu0 %v67
    %838 = vmatpush1.msra.mxu0 %v66
    %839 = vmatprep.subr.mxu0 %v71
    %840 = vmatpush1.msra.mxu0 %v70
    %841 = vmatprep.subr.mxu0 %v75
    %842 = vmatpush1.msra.mxu0 %v74
    %843 = vmatprep.subr.mxu0 %v79
    %844 = vmatpush1.msra.mxu0 %v78
    %845 = vmatprep.subr.mxu0 %v83
    %846 = vmatpush1.msra.mxu0 %v82
    %847 = vmatprep.subr.mxu0 %v87
    %848 = vmatpush1.msra.mxu0 %v86
    %849 = vmatprep.subr.mxu0 %v91
    %850 = vmatpush1.msra.mxu0 %v90
    %851 = vmatprep.subr.mxu0 %v95
    %852 = vmatpush1.msra.mxu0 %v94
    %853 = vmatprep.subr.mxu0 %v99
    %854 = vmatpush1.msra.mxu0 %v98
    %855 = vmatprep.subr.mxu0 %v103
    %856 = vmatpush1.msra.mxu0 %v102
    %857 = vmatprep.subr.mxu0 %v107
    %858 = vmatpush1.msra.mxu0 %v106
    %859 = vmatprep.subr.mxu0 0.0
    %860 = vmatpush1.msra.mxu0 0.0
    %861 = vmatprep.subr.mxu0 0.0
    %862 = vmatpush1.msra.mxu0 0.0
    %863 = vmatprep.subr.mxu0 0.0
    %864 = vmatpush1.msra.mxu0 0.0
    %865 = vmatprep.subr.mxu0 0.0
    %866 = vmatpush1.msra.mxu0 0.0
    %867 = vmatprep.subr.mxu0 0.0
    %868 = vmatpush1.msra.mxu0 0.0
    %869 = vmatprep.subr.mxu0 0.0
    %870 = vmatpush1.msra.mxu0 0.0
    %871 = vmatprep.subr.mxu0 0.0
    %872 = vmatpush1.msra.mxu0 0.0
    %873 = vmatprep.subr.mxu0 0.0
    %874 = vmatpush1.msra.mxu0 0.0
    %875 = vmatprep.subr.mxu0 0.0
    %876 = vmatpush1.msra.mxu0 0.0
    %877 = vmatprep.subr.mxu0 0.0
    %878 = vmatpush1.msra.mxu0 0.0
    %879 = vmatprep.subr.mxu0 0.0
    %880 = vmatpush1.msra.mxu0 0.0
    %881 = vmatprep.subr.mxu0 0.0
    %882 = vmatpush1.msra.mxu0 0.0
    %883 = vmatprep.subr.mxu0 0.0
    %884 = vmatpush1.msra.mxu0 0.0
    %885 = vmatprep.subr.mxu0 0.0
    %886 = vmatpush1.msra.mxu0 0.0
    %887 = vmatprep.subr.mxu0 0.0
    %888 = vmatpush1.msra.mxu0 0.0
    %889 = vmatprep.subr.mxu0 0.0
    %890 = vmatpush1.msra.mxu0 0.0
    %891 = vmatprep.mubr.f32.mxu0 0.0
    %892 = vmatmul.mubr.f32.gmra.mrb[0].mxu0 %v819
    %v893 = vpop.f32.mrb[0].mxu0
    %v894 = vadd.f32 %v823, %v893
    %v895 = vpop.f32.mrb[0].mxu0
    %v896 = vadd.f32 %v824, %v895
    %897 = vdwg.mxu0
    %898 = vmatprep.subr.mxu0 %v49
    %899 = vmatpush1.msra.mxu0 %v48
    %900 = vmatprep.subr.mxu0 %v53
    %901 = vmatpush1.msra.mxu0 %v52
    %902 = vmatprep.subr.mxu0 %v57
    %903 = vmatpush1.msra.mxu0 %v56
    %904 = vmatprep.subr.mxu0 %v61
    %905 = vmatpush1.msra.mxu0 %v60
    %906 = vmatprep.subr.mxu0 %v65
    %907 = vmatpush1.msra.mxu0 %v64
    %908 = vmatprep.subr.mxu0 %v69
    %909 = vmatpush1.msra.mxu0 %v68
    %910 = vmatprep.subr.mxu0 %v73
    %911 = vmatpush1.msra.mxu0 %v72
    %912 = vmatprep.subr.mxu0 %v77
    %913 = vmatpush1.msra.mxu0 %v76
    %914 = vmatprep.subr.mxu0 %v81
    %915 = vmatpush1.msra.mxu0 %v80
    %916 = vmatprep.subr.mxu0 %v85
    %917 = vmatpush1.msra.mxu0 %v84
    %918 = vmatprep.subr.mxu0 %v89
    %919 = vmatpush1.msra.mxu0 %v88
    %920 = vmatprep.subr.mxu0 %v93
    %921 = vmatpush1.msra.mxu0 %v92
    %922 = vmatprep.subr.mxu0 %v97
    %923 = vmatpush1.msra.mxu0 %v96
    %924 = vmatprep.subr.mxu0 %v101
    %925 = vmatpush1.msra.mxu0 %v100
    %926 = vmatprep.subr.mxu0 %v105
    %927 = vmatpush1.msra.mxu0 %v104
    %928 = vmatprep.subr.mxu0 %v109
    %929 = vmatpush1.msra.mxu0 %v108
    %930 = vmatprep.subr.mxu0 0.0
    %931 = vmatpush1.msra.mxu0 0.0
    %932 = vmatprep.subr.mxu0 0.0
    %933 = vmatpush1.msra.mxu0 0.0
    %934 = vmatprep.subr.mxu0 0.0
    %935 = vmatpush1.msra.mxu0 0.0
    %936 = vmatprep.subr.mxu0 0.0
    %937 = vmatpush1.msra.mxu0 0.0
    %938 = vmatprep.subr.mxu0 0.0
    %939 = vmatpush1.msra.mxu0 0.0
    %940 = vmatprep.subr.mxu0 0.0
    %941 = vmatpush1.msra.mxu0 0.0
    %942 = vmatprep.subr.mxu0 0.0
    %943 = vmatpush1.msra.mxu0 0.0
    %944 = vmatprep.subr.mxu0 0.0
    %945 = vmatpush1.msra.mxu0 0.0
    %946 = vmatprep.subr.mxu0 0.0
    %947 = vmatpush1.msra.mxu0 0.0
    %948 = vmatprep.subr.mxu0 0.0
    %949 = vmatpush1.msra.mxu0 0.0
    %950 = vmatprep.subr.mxu0 0.0
    %951 = vmatpush1.msra.mxu0 0.0
    %952 = vmatprep.subr.mxu0 0.0
    %953 = vmatpush1.msra.mxu0 0.0
    %954 = vmatprep.subr.mxu0 0.0
    %955 = vmatpush1.msra.mxu0 0.0
    %956 = vmatprep.subr.mxu0 0.0
    %957 = vmatpush1.msra.mxu0 0.0
    %958 = vmatprep.subr.mxu0 0.0
    %959 = vmatpush1.msra.mxu0 0.0
    %960 = vmatprep.subr.mxu0 0.0
    %961 = vmatpush1.msra.mxu0 0.0
    %962 = vmatprep.mubr.f32.mxu0 0.0
    %963 = vmatmul.mubr.f32.gmra.mrb[0].mxu0 %v819
    %v964 = vpop.f32.mrb[0].mxu0
    %v965 = vadd.f32 %v825, %v964
    %v966 = vpop.f32.mrb[0].mxu0
    %v967 = vadd.f32 %v826, %v966
    %968 = vdwg.mxu0
    %v969 = vxor.u32 %v894, 2147483648
    %v970 = vxor.u32 %v896, 2147483648
    %v971 = vxor.u32 %v965, 2147483648
    %v972 = vxor.u32 %v967, 2147483648
    %v973 = vmul.f32 %v969, 1.442695
    %v974 = vpow.pop %v973
    %v975 = vmul.f32 %v970, 1.442695
    %v976 = vpow.pop %v975
    %v977 = vmul.f32 %v971, 1.442695
    %v978 = vpow.pop %v977
    %v979 = vmul.f32 %v972, 1.442695
    %v980 = vpow.pop %v979
    %v981 = vadd.f32 %v974, 1.0
    %v982 = vadd.f32 %v976, 1.0
    %v983 = vadd.f32 %v978, 1.0
    %v984 = vadd.f32 %v980, 1.0
    %v985 = vrcp.pop %v981
    %v986 = vmul.f32 1.0, %v985
    %v987 = vrcp.pop %v982
    %v988 = vmul.f32 1.0, %v987
    %v989 = vrcp.pop %v983
    %v990 = vmul.f32 1.0, %v989
    %v991 = vrcp.pop %v984
    %v992 = vmul.f32 1.0, %v991
    %v993 = vmul.f32 %v988, %v817
    %v994 = vmul.f32 %v986, %v992
    %v995 = vadd.f32 %v993, %v994
    %v996 = vtanh.pop %v995
    %v997 = vmul.f32 %v990, %v996
    %s998 = scalar_lea.vmem [#allocation9], 32
    %999 = vst [vmem:[%s998] sm:$0xff] %v997
    %s1000 = scalar_lea.vmem [#allocation4], 160
    %v1001 = vld [vmem:[%s1000] sm:$0xff]
    %v1002 = vld [vmem:[%s1000 + $0x8] sm:$0xff]
    %v1003 = vld [vmem:[%s1000 + $0x10] sm:$0xff]
    %v1004 = vld [vmem:[%s1000 + $0x18] sm:$0xff]
    %1005 = vmatprep.subr.mxu0 %v47
    %1006 = vmatpush1.msra.mxu0 %v46
    %1007 = vmatprep.subr.mxu0 %v51
    %1008 = vmatpush1.msra.mxu0 %v50
    %1009 = vmatprep.subr.mxu0 %v55
    %1010 = vmatpush1.msra.mxu0 %v54
    %1011 = vmatprep.subr.mxu0 %v59
    %1012 = vmatpush1.msra.mxu0 %v58
    %1013 = vmatprep.subr.mxu0 %v63
    %1014 = vmatpush1.msra.mxu0 %v62
    %1015 = vmatprep.subr.mxu0 %v67
    %1016 = vmatpush1.msra.mxu0 %v66
    %1017 = vmatprep.subr.mxu0 %v71
    %1018 = vmatpush1.msra.mxu0 %v70
    %1019 = vmatprep.subr.mxu0 %v75
    %1020 = vmatpush1.msra.mxu0 %v74
    %1021 = vmatprep.subr.mxu0 %v79
    %1022 = vmatpush1.msra.mxu0 %v78
    %1023 = vmatprep.subr.mxu0 %v83
    %1024 = vmatpush1.msra.mxu0 %v82
    %1025 = vmatprep.subr.mxu0 %v87
    %1026 = vmatpush1.msra.mxu0 %v86
    %1027 = vmatprep.subr.mxu0 %v91
    %1028 = vmatpush1.msra.mxu0 %v90
    %1029 = vmatprep.subr.mxu0 %v95
    %1030 = vmatpush1.msra.mxu0 %v94
    %1031 = vmatprep.subr.mxu0 %v99
    %1032 = vmatpush1.msra.mxu0 %v98
    %1033 = vmatprep.subr.mxu0 %v103
    %1034 = vmatpush1.msra.mxu0 %v102
    %1035 = vmatprep.subr.mxu0 %v107
    %1036 = vmatpush1.msra.mxu0 %v106
    %1037 = vmatprep.subr.mxu0 0.0
    %1038 = vmatpush1.msra.mxu0 0.0
    %1039 = vmatprep.subr.mxu0 0.0
    %1040 = vmatpush1.msra.mxu0 0.0
    %1041 = vmatprep.subr.mxu0 0.0
    %1042 = vmatpush1.msra.mxu0 0.0
    %1043 = vmatprep.subr.mxu0 0.0
    %1044 = vmatpush1.msra.mxu0 0.0
    %1045 = vmatprep.subr.mxu0 0.0
    %1046 = vmatpush1.msra.mxu0 0.0
    %1047 = vmatprep.subr.mxu0 0.0
    %1048 = vmatpush1.msra.mxu0 0.0
    %1049 = vmatprep.subr.mxu0 0.0
    %1050 = vmatpush1.msra.mxu0 0.0
    %1051 = vmatprep.subr.mxu0 0.0
    %1052 = vmatpush1.msra.mxu0 0.0
    %1053 = vmatprep.subr.mxu0 0.0
    %1054 = vmatpush1.msra.mxu0 0.0
    %1055 = vmatprep.subr.mxu0 0.0
    %1056 = vmatpush1.msra.mxu0 0.0
    %1057 = vmatprep.subr.mxu0 0.0
    %1058 = vmatpush1.msra.mxu0 0.0
    %1059 = vmatprep.subr.mxu0 0.0
    %1060 = vmatpush1.msra.mxu0 0.0
    %1061 = vmatprep.subr.mxu0 0.0
    %1062 = vmatpush1.msra.mxu0 0.0
    %1063 = vmatprep.subr.mxu0 0.0
    %1064 = vmatpush1.msra.mxu0 0.0
    %1065 = vmatprep.subr.mxu0 0.0
    %1066 = vmatpush1.msra.mxu0 0.0
    %1067 = vmatprep.subr.mxu0 0.0
    %1068 = vmatpush1.msra.mxu0 0.0
    %1069 = vmatprep.mubr.f32.mxu0 0.0
    %1070 = vmatmul.mubr.f32.gmra.mrb[0].mxu0 %v997
    %v1071 = vpop.f32.mrb[0].mxu0
    %v1072 = vadd.f32 %v1001, %v1071
    %v1073 = vpop.f32.mrb[0].mxu0
    %v1074 = vadd.f32 %v1002, %v1073
    %1075 = vdwg.mxu0
    %1076 = vmatprep.subr.mxu0 %v49
    %1077 = vmatpush1.msra.mxu0 %v48
    %1078 = vmatprep.subr.mxu0 %v53
    %1079 = vmatpush1.msra.mxu0 %v52
    %1080 = vmatprep.subr.mxu0 %v57
    %1081 = vmatpush1.msra.mxu0 %v56
    %1082 = vmatprep.subr.mxu0 %v61
    %1083 = vmatpush1.msra.mxu0 %v60
    %1084 = vmatprep.subr.mxu0 %v65
    %1085 = vmatpush1.msra.mxu0 %v64
    %1086 = vmatprep.subr.mxu0 %v69
    %1087 = vmatpush1.msra.mxu0 %v68
    %1088 = vmatprep.subr.mxu0 %v73
    %1089 = vmatpush1.msra.mxu0 %v72
    %1090 = vmatprep.subr.mxu0 %v77
    %1091 = vmatpush1.msra.mxu0 %v76
    %1092 = vmatprep.subr.mxu0 %v81
    %1093 = vmatpush1.msra.mxu0 %v80
    %1094 = vmatprep.subr.mxu0 %v85
    %1095 = vmatpush1.msra.mxu0 %v84
    %1096 = vmatprep.subr.mxu0 %v89
    %1097 = vmatpush1.msra.mxu0 %v88
    %1098 = vmatprep.subr.mxu0 %v93
    %1099 = vmatpush1.msra.mxu0 %v92
    %1100 = vmatprep.subr.mxu0 %v97
    %1101 = vmatpush1.msra.mxu0 %v96
    %1102 = vmatprep.subr.mxu0 %v101
    %1103 = vmatpush1.msra.mxu0 %v100
    %1104 = vmatprep.subr.mxu0 %v105
    %1105 = vmatpush1.msra.mxu0 %v104
    %1106 = vmatprep.subr.mxu0 %v109
    %1107 = vmatpush1.msra.mxu0 %v108
    %1108 = vmatprep.subr.mxu0 0.0
    %1109 = vmatpush1.msra.mxu0 0.0
    %1110 = vmatprep.subr.mxu0 0.0
    %1111 = vmatpush1.msra.mxu0 0.0
    %1112 = vmatprep.subr.mxu0 0.0
    %1113 = vmatpush1.msra.mxu0 0.0
    %1114 = vmatprep.subr.mxu0 0.0
    %1115 = vmatpush1.msra.mxu0 0.0
    %1116 = vmatprep.subr.mxu0 0.0
    %1117 = vmatpush1.msra.mxu0 0.0
    %1118 = vmatprep.subr.mxu0 0.0
    %1119 = vmatpush1.msra.mxu0 0.0
    %1120 = vmatprep.subr.mxu0 0.0
    %1121 = vmatpush1.msra.mxu0 0.0
    %1122 = vmatprep.subr.mxu0 0.0
    %1123 = vmatpush1.msra.mxu0 0.0
    %1124 = vmatprep.subr.mxu0 0.0
    %1125 = vmatpush1.msra.mxu0 0.0
    %1126 = vmatprep.subr.mxu0 0.0
    %1127 = vmatpush1.msra.mxu0 0.0
    %1128 = vmatprep.subr.mxu0 0.0
    %1129 = vmatpush1.msra.mxu0 0.0
    %1130 = vmatprep.subr.mxu0 0.0
    %1131 = vmatpush1.msra.mxu0 0.0
    %1132 = vmatprep.subr.mxu0 0.0
    %1133 = vmatpush1.msra.mxu0 0.0
    %1134 = vmatprep.subr.mxu0 0.0
    %1135 = vmatpush1.msra.mxu0 0.0
    %1136 = vmatprep.subr.mxu0 0.0
    %1137 = vmatpush1.msra.mxu0 0.0
    %1138 = vmatprep.subr.mxu0 0.0
    %1139 = vmatpush1.msra.mxu0 0.0
    %1140 = vmatprep.mubr.f32.mxu0 0.0
    %1141 = vmatmul.mubr.f32.gmra.mrb[0].mxu0 %v997
    %v1142 = vpop.f32.mrb[0].mxu0
    %v1143 = vadd.f32 %v1003, %v1142
    %v1144 = vpop.f32.mrb[0].mxu0
    %v1145 = vadd.f32 %v1004, %v1144
    %1146 = vdwg.mxu0
    %v1147 = vxor.u32 %v1072, 2147483648
    %v1148 = vxor.u32 %v1074, 2147483648
    %v1149 = vxor.u32 %v1143, 2147483648
    %v1150 = vxor.u32 %v1145, 2147483648
    %v1151 = vmul.f32 %v1147, 1.442695
    %v1152 = vpow.pop %v1151
    %v1153 = vmul.f32 %v1148, 1.442695
    %v1154 = vpow.pop %v1153
    %v1155 = vmul.f32 %v1149, 1.442695
    %v1156 = vpow.pop %v1155
    %v1157 = vmul.f32 %v1150, 1.442695
    %v1158 = vpow.pop %v1157
    %v1159 = vadd.f32 %v1152, 1.0
    %v1160 = vadd.f32 %v1154, 1.0
    %v1161 = vadd.f32 %v1156, 1.0
    %v1162 = vadd.f32 %v1158, 1.0
    %v1163 = vrcp.pop %v1159
    %v1164 = vmul.f32 1.0, %v1163
    %v1165 = vrcp.pop %v1160
    %v1166 = vmul.f32 1.0, %v1165
    %v1167 = vrcp.pop %v1161
    %v1168 = vmul.f32 1.0, %v1167
    %v1169 = vrcp.pop %v1162
    %v1170 = vmul.f32 1.0, %v1169
    %v1171 = vmul.f32 %v1166, %v995
    %v1172 = vmul.f32 %v1164, %v1170
    %v1173 = vadd.f32 %v1171, %v1172
    %v1174 = vtanh.pop %v1173
    %v1175 = vmul.f32 %v1168, %v1174
    %s1176 = scalar_lea.vmem [#allocation9], 40
    %1177 = vst [vmem:[%s1176] sm:$0xff] %v1175
    %s1178 = scalar_lea.vmem [#allocation4], 192
    %v1179 = vld [vmem:[%s1178] sm:$0xff]
    %v1180 = vld [vmem:[%s1178 + $0x8] sm:$0xff]
    %v1181 = vld [vmem:[%s1178 + $0x10] sm:$0xff]
    %v1182 = vld [vmem:[%s1178 + $0x18] sm:$0xff]
    %1183 = vmatprep.subr.mxu0 %v47
    %1184 = vmatpush1.msra.mxu0 %v46
    %1185 = vmatprep.subr.mxu0 %v51
    %1186 = vmatpush1.msra.mxu0 %v50
    %1187 = vmatprep.subr.mxu0 %v55
    %1188 = vmatpush1.msra.mxu0 %v54
    %1189 = vmatprep.subr.mxu0 %v59
    %1190 = vmatpush1.msra.mxu0 %v58
    %1191 = vmatprep.subr.mxu0 %v63
    %1192 = vmatpush1.msra.mxu0 %v62
    %1193 = vmatprep.subr.mxu0 %v67
    %1194 = vmatpush1.msra.mxu0 %v66
    %1195 = vmatprep.subr.mxu0 %v71
    %1196 = vmatpush1.msra.mxu0 %v70
    %1197 = vmatprep.subr.mxu0 %v75
    %1198 = vmatpush1.msra.mxu0 %v74
    %1199 = vmatprep.subr.mxu0 %v79
    %1200 = vmatpush1.msra.mxu0 %v78
    %1201 = vmatprep.subr.mxu0 %v83
    %1202 = vmatpush1.msra.mxu0 %v82
    %1203 = vmatprep.subr.mxu0 %v87
    %1204 = vmatpush1.msra.mxu0 %v86
    %1205 = vmatprep.subr.mxu0 %v91
    %1206 = vmatpush1.msra.mxu0 %v90
    %1207 = vmatprep.subr.mxu0 %v95
    %1208 = vmatpush1.msra.mxu0 %v94
    %1209 = vmatprep.subr.mxu0 %v99
    %1210 = vmatpush1.msra.mxu0 %v98
    %1211 = vmatprep.subr.mxu0 %v103
    %1212 = vmatpush1.msra.mxu0 %v102
    %1213 = vmatprep.subr.mxu0 %v107
    %1214 = vmatpush1.msra.mxu0 %v106
    %1215 = vmatprep.subr.mxu0 0.0
    %1216 = vmatpush1.msra.mxu0 0.0
    %1217 = vmatprep.subr.mxu0 0.0
    %1218 = vmatpush1.msra.mxu0 0.0
    %1219 = vmatprep.subr.mxu0 0.0
    %1220 = vmatpush1.msra.mxu0 0.0
    %1221 = vmatprep.subr.mxu0 0.0
    %1222 = vmatpush1.msra.mxu0 0.0
    %1223 = vmatprep.subr.mxu0 0.0
    %1224 = vmatpush1.msra.mxu0 0.0
    %1225 = vmatprep.subr.mxu0 0.0
    %1226 = vmatpush1.msra.mxu0 0.0
    %1227 = vmatprep.subr.mxu0 0.0
    %1228 = vmatpush1.msra.mxu0 0.0
    %1229 = vmatprep.subr.mxu0 0.0
    %1230 = vmatpush1.msra.mxu0 0.0
    %1231 = vmatprep.subr.mxu0 0.0
    %1232 = vmatpush1.msra.mxu0 0.0
    %1233 = vmatprep.subr.mxu0 0.0
    %1234 = vmatpush1.msra.mxu0 0.0
    %1235 = vmatprep.subr.mxu0 0.0
    %1236 = vmatpush1.msra.mxu0 0.0
    %1237 = vmatprep.subr.mxu0 0.0
    %1238 = vmatpush1.msra.mxu0 0.0
    %1239 = vmatprep.subr.mxu0 0.0
    %1240 = vmatpush1.msra.mxu0 0.0
    %1241 = vmatprep.subr.mxu0 0.0
    %1242 = vmatpush1.msra.mxu0 0.0
    %1243 = vmatprep.subr.mxu0 0.0
    %1244 = vmatpush1.msra.mxu0 0.0
    %1245 = vmatprep.subr.mxu0 0.0
    %1246 = vmatpush1.msra.mxu0 0.0
    %1247 = vmatprep.mubr.f32.mxu0 0.0
    %1248 = vmatmul.mubr.f32.gmra.mrb[0].mxu0 %v1175
    %v1249 = vpop.f32.mrb[0].mxu0
    %v1250 = vadd.f32 %v1179, %v1249
    %v1251 = vpop.f32.mrb[0].mxu0
    %v1252 = vadd.f32 %v1180, %v1251
    %1253 = vdwg.mxu0
    %1254 = vmatprep.subr.mxu0 %v49
    %1255 = vmatpush1.msra.mxu0 %v48
    %1256 = vmatprep.subr.mxu0 %v53
    %1257 = vmatpush1.msra.mxu0 %v52
    %1258 = vmatprep.subr.mxu0 %v57
    %1259 = vmatpush1.msra.mxu0 %v56
    %1260 = vmatprep.subr.mxu0 %v61
    %1261 = vmatpush1.msra.mxu0 %v60
    %1262 = vmatprep.subr.mxu0 %v65
    %1263 = vmatpush1.msra.mxu0 %v64
    %1264 = vmatprep.subr.mxu0 %v69
    %1265 = vmatpush1.msra.mxu0 %v68
    %1266 = vmatprep.subr.mxu0 %v73
    %1267 = vmatpush1.msra.mxu0 %v72
    %1268 = vmatprep.subr.mxu0 %v77
    %1269 = vmatpush1.msra.mxu0 %v76
    %1270 = vmatprep.subr.mxu0 %v81
    %1271 = vmatpush1.msra.mxu0 %v80
    %1272 = vmatprep.subr.mxu0 %v85
    %1273 = vmatpush1.msra.mxu0 %v84
    %1274 = vmatprep.subr.mxu0 %v89
    %1275 = vmatpush1.msra.mxu0 %v88
    %1276 = vmatprep.subr.mxu0 %v93
    %1277 = vmatpush1.msra.mxu0 %v92
    %1278 = vmatprep.subr.mxu0 %v97
    %1279 = vmatpush1.msra.mxu0 %v96
    %1280 = vmatprep.subr.mxu0 %v101
    %1281 = vmatpush1.msra.mxu0 %v100
    %1282 = vmatprep.subr.mxu0 %v105
    %1283 = vmatpush1.msra.mxu0 %v104
    %1284 = vmatprep.subr.mxu0 %v109
    %1285 = vmatpush1.msra.mxu0 %v108
    %1286 = vmatprep.subr.mxu0 0.0
    %1287 = vmatpush1.msra.mxu0 0.0
    %1288 = vmatprep.subr.mxu0 0.0
    %1289 = vmatpush1.msra.mxu0 0.0
    %1290 = vmatprep.subr.mxu0 0.0
    %1291 = vmatpush1.msra.mxu0 0.0
    %1292 = vmatprep.subr.mxu0 0.0
    %1293 = vmatpush1.msra.mxu0 0.0
    %1294 = vmatprep.subr.mxu0 0.0
    %1295 = vmatpush1.msra.mxu0 0.0
    %1296 = vmatprep.subr.mxu0 0.0
    %1297 = vmatpush1.msra.mxu0 0.0
    %1298 = vmatprep.subr.mxu0 0.0
    %1299 = vmatpush1.msra.mxu0 0.0
    %1300 = vmatprep.subr.mxu0 0.0
    %1301 = vmatpush1.msra.mxu0 0.0
    %1302 = vmatprep.subr.mxu0 0.0
    %1303 = vmatpush1.msra.mxu0 0.0
    %1304 = vmatprep.subr.mxu0 0.0
    %1305 = vmatpush1.msra.mxu0 0.0
    %1306 = vmatprep.subr.mxu0 0.0
    %1307 = vmatpush1.msra.mxu0 0.0
    %1308 = vmatprep.subr.mxu0 0.0
    %1309 = vmatpush1.msra.mxu0 0.0
    %1310 = vmatprep.subr.mxu0 0.0
    %1311 = vmatpush1.msra.mxu0 0.0
    %1312 = vmatprep.subr.mxu0 0.0
    %1313 = vmatpush1.msra.mxu0 0.0
    %1314 = vmatprep.subr.mxu0 0.0
    %1315 = vmatpush1.msra.mxu0 0.0
    %1316 = vmatprep.subr.mxu0 0.0
    %1317 = vmatpush1.msra.mxu0 0.0
    %1318 = vmatprep.mubr.f32.mxu0 0.0
    %1319 = vmatmul.mubr.f32.gmra.mrb[0].mxu0 %v1175
    %v1320 = vpop.f32.mrb[0].mxu0
    %v1321 = vadd.f32 %v1181, %v1320
    %v1322 = vpop.f32.mrb[0].mxu0
    %v1323 = vadd.f32 %v1182, %v1322
    %1324 = vdwg.mxu0
    %v1325 = vxor.u32 %v1250, 2147483648
    %v1326 = vxor.u32 %v1252, 2147483648
    %v1327 = vxor.u32 %v1321, 2147483648
    %v1328 = vxor.u32 %v1323, 2147483648
    %v1329 = vmul.f32 %v1325, 1.442695
    %v1330 = vpow.pop %v1329
    %v1331 = vmul.f32 %v1326, 1.442695
    %v1332 = vpow.pop %v1331
    %v1333 = vmul.f32 %v1327, 1.442695
    %v1334 = vpow.pop %v1333
    %v1335 = vmul.f32 %v1328, 1.442695
    %v1336 = vpow.pop %v1335
    %v1337 = vadd.f32 %v1330, 1.0
    %v1338 = vadd.f32 %v1332, 1.0
    %v1339 = vadd.f32 %v1334, 1.0
    %v1340 = vadd.f32 %v1336, 1.0
    %v1341 = vrcp.pop %v1337
    %v1342 = vmul.f32 1.0, %v1341
    %v1343 = vrcp.pop %v1338
    %v1344 = vmul.f32 1.0, %v1343
    %v1345 = vrcp.pop %v1339
    %v1346 = vmul.f32 1.0, %v1345
    %v1347 = vrcp.pop %v1340
    %v1348 = vmul.f32 1.0, %v1347
    %v1349 = vmul.f32 %v1344, %v1173
    %v1350 = vmul.f32 %v1342, %v1348
    %v1351 = vadd.f32 %v1349, %v1350
    %v1352 = vtanh.pop %v1351
    %v1353 = vmul.f32 %v1346, %v1352
    %s1354 = scalar_lea.vmem [#allocation9], 48
    %1355 = vst [vmem:[%s1354] sm:$0xff] %v1353
    %s1356 = scalar_lea.vmem [#allocation4], 224
    %v1357 = vld [vmem:[%s1356] sm:$0xff]
    %v1358 = vld [vmem:[%s1356 + $0x8] sm:$0xff]
    %v1359 = vld [vmem:[%s1356 + $0x10] sm:$0xff]
    %v1360 = vld [vmem:[%s1356 + $0x18] sm:$0xff]
    %1361 = vmatprep.subr.mxu0 %v47
    %1362 = vmatpush1.msra.mxu0 %v46
    %1363 = vmatprep.subr.mxu0 %v51
    %1364 = vmatpush1.msra.mxu0 %v50
    %1365 = vmatprep.subr.mxu0 %v55
    %1366 = vmatpush1.msra.mxu0 %v54
    %1367 = vmatprep.subr.mxu0 %v59
    %1368 = vmatpush1.msra.mxu0 %v58
    %1369 = vmatprep.subr.mxu0 %v63
    %1370 = vmatpush1.msra.mxu0 %v62
    %1371 = vmatprep.subr.mxu0 %v67
    %1372 = vmatpush1.msra.mxu0 %v66
    %1373 = vmatprep.subr.mxu0 %v71
    %1374 = vmatpush1.msra.mxu0 %v70
    %1375 = vmatprep.subr.mxu0 %v75
    %1376 = vmatpush1.msra.mxu0 %v74
    %1377 = vmatprep.subr.mxu0 %v79
    %1378 = vmatpush1.msra.mxu0 %v78
    %1379 = vmatprep.subr.mxu0 %v83
    %1380 = vmatpush1.msra.mxu0 %v82
    %1381 = vmatprep.subr.mxu0 %v87
    %1382 = vmatpush1.msra.mxu0 %v86
    %1383 = vmatprep.subr.mxu0 %v91
    %1384 = vmatpush1.msra.mxu0 %v90
    %1385 = vmatprep.subr.mxu0 %v95
    %1386 = vmatpush1.msra.mxu0 %v94
    %1387 = vmatprep.subr.mxu0 %v99
    %1388 = vmatpush1.msra.mxu0 %v98
    %1389 = vmatprep.subr.mxu0 %v103
    %1390 = vmatpush1.msra.mxu0 %v102
    %1391 = vmatprep.subr.mxu0 %v107
    %1392 = vmatpush1.msra.mxu0 %v106
    %1393 = vmatprep.subr.mxu0 0.0
    %1394 = vmatpush1.msra.mxu0 0.0
    %1395 = vmatprep.subr.mxu0 0.0
    %1396 = vmatpush1.msra.mxu0 0.0
    %1397 = vmatprep.subr.mxu0 0.0
    %1398 = vmatpush1.msra.mxu0 0.0
    %1399 = vmatprep.subr.mxu0 0.0
    %1400 = vmatpush1.msra.mxu0 0.0
    %1401 = vmatprep.subr.mxu0 0.0
    %1402 = vmatpush1.msra.mxu0 0.0
    %1403 = vmatprep.subr.mxu0 0.0
    %1404 = vmatpush1.msra.mxu0 0.0
    %1405 = vmatprep.subr.mxu0 0.0
    %1406 = vmatpush1.msra.mxu0 0.0
    %1407 = vmatprep.subr.mxu0 0.0
    %1408 = vmatpush1.msra.mxu0 0.0
    %1409 = vmatprep.subr.mxu0 0.0
    %1410 = vmatpush1.msra.mxu0 0.0
    %1411 = vmatprep.subr.mxu0 0.0
    %1412 = vmatpush1.msra.mxu0 0.0
    %1413 = vmatprep.subr.mxu0 0.0
    %1414 = vmatpush1.msra.mxu0 0.0
    %1415 = vmatprep.subr.mxu0 0.0
    %1416 = vmatpush1.msra.mxu0 0.0
    %1417 = vmatprep.subr.mxu0 0.0
    %1418 = vmatpush1.msra.mxu0 0.0
    %1419 = vmatprep.subr.mxu0 0.0
    %1420 = vmatpush1.msra.mxu0 0.0
    %1421 = vmatprep.subr.mxu0 0.0
    %1422 = vmatpush1.msra.mxu0 0.0
    %1423 = vmatprep.subr.mxu0 0.0
    %1424 = vmatpush1.msra.mxu0 0.0
    %1425 = vmatprep.mubr.f32.mxu0 0.0
    %1426 = vmatmul.mubr.f32.gmra.mrb[0].mxu0 %v1353
    %v1427 = vpop.f32.mrb[0].mxu0
    %v1428 = vadd.f32 %v1357, %v1427
    %v1429 = vpop.f32.mrb[0].mxu0
    %v1430 = vadd.f32 %v1358, %v1429
    %1431 = vdwg.mxu0
    %1432 = vmatprep.subr.mxu0 %v49
    %1433 = vmatpush1.msra.mxu0 %v48
    %1434 = vmatprep.subr.mxu0 %v53
    %1435 = vmatpush1.msra.mxu0 %v52
    %1436 = vmatprep.subr.mxu0 %v57
    %1437 = vmatpush1.msra.mxu0 %v56
    %1438 = vmatprep.subr.mxu0 %v61
    %1439 = vmatpush1.msra.mxu0 %v60
    %1440 = vmatprep.subr.mxu0 %v65
    %1441 = vmatpush1.msra.mxu0 %v64
    %1442 = vmatprep.subr.mxu0 %v69
    %1443 = vmatpush1.msra.mxu0 %v68
    %1444 = vmatprep.subr.mxu0 %v73
    %1445 = vmatpush1.msra.mxu0 %v72
    %1446 = vmatprep.subr.mxu0 %v77
    %1447 = vmatpush1.msra.mxu0 %v76
    %1448 = vmatprep.subr.mxu0 %v81
    %1449 = vmatpush1.msra.mxu0 %v80
    %1450 = vmatprep.subr.mxu0 %v85
    %1451 = vmatpush1.msra.mxu0 %v84
    %1452 = vmatprep.subr.mxu0 %v89
    %1453 = vmatpush1.msra.mxu0 %v88
    %1454 = vmatprep.subr.mxu0 %v93
    %1455 = vmatpush1.msra.mxu0 %v92
    %1456 = vmatprep.subr.mxu0 %v97
    %1457 = vmatpush1.msra.mxu0 %v96
    %1458 = vmatprep.subr.mxu0 %v101
    %1459 = vmatpush1.msra.mxu0 %v100
    %1460 = vmatprep.subr.mxu0 %v105
    %1461 = vmatpush1.msra.mxu0 %v104
    %1462 = vmatprep.subr.mxu0 %v109
    %1463 = vmatpush1.msra.mxu0 %v108
    %1464 = vmatprep.subr.mxu0 0.0
    %1465 = vmatpush1.msra.mxu0 0.0
    %1466 = vmatprep.subr.mxu0 0.0
    %1467 = vmatpush1.msra.mxu0 0.0
    %1468 = vmatprep.subr.mxu0 0.0
    %1469 = vmatpush1.msra.mxu0 0.0
    %1470 = vmatprep.subr.mxu0 0.0
    %1471 = vmatpush1.msra.mxu0 0.0
    %1472 = vmatprep.subr.mxu0 0.0
    %1473 = vmatpush1.msra.mxu0 0.0
    %1474 = vmatprep.subr.mxu0 0.0
    %1475 = vmatpush1.msra.mxu0 0.0
    %1476 = vmatprep.subr.mxu0 0.0
    %1477 = vmatpush1.msra.mxu0 0.0
    %1478 = vmatprep.subr.mxu0 0.0
    %1479 = vmatpush1.msra.mxu0 0.0
    %1480 = vmatprep.subr.mxu0 0.0
    %1481 = vmatpush1.msra.mxu0 0.0
    %1482 = vmatprep.subr.mxu0 0.0
    %1483 = vmatpush1.msra.mxu0 0.0
    %1484 = vmatprep.subr.mxu0 0.0
    %1485 = vmatpush1.msra.mxu0 0.0
    %1486 = vmatprep.subr.mxu0 0.0
    %1487 = vmatpush1.msra.mxu0 0.0
    %1488 = vmatprep.subr.mxu0 0.0
    %1489 = vmatpush1.msra.mxu0 0.0
    %1490 = vmatprep.subr.mxu0 0.0
    %1491 = vmatpush1.msra.mxu0 0.0
    %1492 = vmatprep.subr.mxu0 0.0
    %1493 = vmatpush1.msra.mxu0 0.0
    %1494 = vmatprep.subr.mxu0 0.0
    %1495 = vmatpush1.msra.mxu0 0.0
    %1496 = vmatprep.mubr.f32.mxu0 0.0
    %1497 = vmatmul.mubr.f32.gmra.mrb[0].mxu0 %v1353
    %v1498 = vpop.f32.mrb[0].mxu0
    %v1499 = vadd.f32 %v1359, %v1498
    %v1500 = vpop.f32.mrb[0].mxu0
    %v1501 = vadd.f32 %v1360, %v1500
    %1502 = vdwg.mxu0
    %v1503 = vxor.u32 %v1428, 2147483648
    %v1504 = vxor.u32 %v1430, 2147483648
    %v1505 = vxor.u32 %v1499, 2147483648
    %v1506 = vxor.u32 %v1501, 2147483648
    %v1507 = vmul.f32 %v1503, 1.442695
    %v1508 = vpow.pop %v1507
    %v1509 = vmul.f32 %v1504, 1.442695
    %v1510 = vpow.pop %v1509
    %v1511 = vmul.f32 %v1505, 1.442695
    %v1512 = vpow.pop %v1511
    %v1513 = vmul.f32 %v1506, 1.442695
    %v1514 = vpow.pop %v1513
    %v1515 = vadd.f32 %v1508, 1.0
    %v1516 = vadd.f32 %v1510, 1.0
    %v1517 = vadd.f32 %v1512, 1.0
    %v1518 = vadd.f32 %v1514, 1.0
    %v1519 = vrcp.pop %v1515
    %v1520 = vmul.f32 1.0, %v1519
    %v1521 = vrcp.pop %v1516
    %v1522 = vmul.f32 1.0, %v1521
    %v1523 = vrcp.pop %v1517
    %v1524 = vmul.f32 1.0, %v1523
    %v1525 = vrcp.pop %v1518
    %v1526 = vmul.f32 1.0, %v1525
    %v1527 = vmul.f32 %v1522, %v1351
    %v1528 = vmul.f32 %v1520, %v1526
    %v1529 = vadd.f32 %v1527, %v1528
    %v1530 = vtanh.pop %v1529
    %v1531 = vmul.f32 %v1524, %v1530
    %s1532 = scalar_lea.vmem [#allocation9], 56
    %1533 = vst [vmem:[%s1532] sm:$0xff] %v1531
    %1534 = vst [vmem:[#allocation2] sm:$0xff] %v1531
    %1535 = vst [vmem:[#allocation3] sm:$0xff] %v1529
    // Predicated region
    $region22: #{tpu_custom_call.1} parent=1 // pred_check
      _
    $region23: #{tpu_custom_call.1} parent=1 // pred_check_branch
      %1537 = sbr.rel (0) target = $region25
    $region24: #{tpu_custom_call.1} parent=1 // pred_region
      %s1539 = ssub.s32 1024, 1024
      %1540 = vsyncadd [#allocation6], %s1539
      %s1541 = sshll.u32 [#allocation9], 4
      %s1542 = int_to_ptr.vmem [resolvable:$true] %s1541
      %1547 = dma.vmem_to_hbm [thread:$0]  %s1542, 1024, %s2, [#allocation6], 128, 128, 8
    $region25: #{tpu_custom_call.1} parent=1 // pred_fallthru
      _
    // Predicated region
    $region26: #{tpu_custom_call.1} parent=1 // pred_check
      _
    $region27: #{tpu_custom_call.1} parent=1 // pred_check_branch
      %1549 = sbr.rel (0) target = $region29
    $region28: #{tpu_custom_call.1} parent=1 // pred_region
      %1550 = dma.done [#allocation6], 1024
    $region29: #{tpu_custom_call.1} parent=1 // pred_fallthru
      _
    %1551 = vsyncpa [#allocation5], 1
    %1552 = vsyncpa [#allocation8], 1
    %1553 = vsyncpa [#allocation6], 1

</llo_original>
